<compile_context>
chip_gen: v5e
topology: v5e:2x2
jax: 0.10.0
libtpu: 0.0.40
codegen_flags: <defaults>
</compile_context>

<pallas_src>
import functools
import math

import jax
import jax.numpy as jnp
from jax import lax
from jax.experimental import pallas as pl
from jax.experimental.pallas import tpu as pltpu

LN_EPS = 1e-5  # PyTorch LayerNorm default


def _layer_norm(h, gamma, beta):
    mu = jnp.mean(h, axis=-1, keepdims=True)
    var = jnp.mean((h - mu) ** 2, axis=-1, keepdims=True)
    return (h - mu) * (lax.rsqrt(var + LN_EPS) * gamma) + beta


def _encoder_stack_kernel(x_ref, wqkv_ref, bqkv_ref, wo_ref, bo_ref,
                          w1_ref, b1_ref, w2_ref, b2_ref,
                          g1_ref, be1_ref, g2_ref, be2_ref,
                          o_ref, act_ref, *, num_heads, batch, seq):
    l = pl.program_id(0)

    @pl.when(l == 0)
    def _():
        act_ref[...] = x_ref[...].astype(jnp.float32)

    x = act_ref[...]                                  # (B*S, E) f32, carried across layers
    BS, E = x.shape
    dh = E // num_heads
    xb = x.astype(jnp.bfloat16)

    # ---- fused QKV projection: one (B*S,E)x(E,3E) MXU matmul (1/sqrt(dh) folded in Q) ----
    qkv = jnp.dot(xb, wqkv_ref[...], preferred_element_type=jnp.float32) + bqkv_ref[...]
    q = qkv[:, 0:E].reshape(batch, seq, E)
    k = qkv[:, E:2 * E].reshape(batch, seq, E)
    v = qkv[:, 2 * E:3 * E].reshape(batch, seq, E)

    # ---- per-head attention; contexts kept in registers, concatenated lane-dense ----
    # TODO(synk): for large num_heads/S, switch to a single batched (B*H,S,dh) dot to avoid
    #             per-head sub-128 lane slices and vreg pressure from the unrolled loop.
    ctx_heads = []
    for h in range(num_heads):
        sl = slice(h * dh, (h + 1) * dh)
        qh = q[:, :, sl].astype(jnp.bfloat16)
        kh = k[:, :, sl].astype(jnp.bfloat16)
        vh = v[:, :, sl].astype(jnp.bfloat16)
        s = jnp.einsum('bqd,bkd->bqk', qh, kh, preferred_element_type=jnp.float32)
        s = s - jnp.max(s, axis=-1, keepdims=True)
        p = jnp.exp(s)
        p = p * pl.reciprocal(jnp.sum(p, axis=-1, keepdims=True), approx=True)
        ctx_heads.append(jnp.einsum('bqk,bkd->bqd', p.astype(jnp.bfloat16), vh,
                                    preferred_element_type=jnp.float32))
    ctx = jnp.concatenate(ctx_heads, axis=-1).reshape(BS, E).astype(jnp.bfloat16)

    # ---- single out-projection, full contraction K=E ----
    attn = jnp.dot(ctx, wo_ref[...], preferred_element_type=jnp.float32) + bo_ref[...]

    # ---- residual + LayerNorm1 ----
    h1 = _layer_norm(x + attn, g1_ref[...], be1_ref[...])

    # ---- feed-forward (weights (in, out)) ----
    f = jnp.dot(h1.astype(jnp.bfloat16), w1_ref[...],
                preferred_element_type=jnp.float32) + b1_ref[...]
    f = jnp.maximum(f, 0.0)
    f = jnp.dot(f.astype(jnp.bfloat16), w2_ref[...],
                preferred_element_type=jnp.float32) + b2_ref[...]

    # ---- residual + LayerNorm2 ----
    out = _layer_norm(h1 + f, g2_ref[...], be2_ref[...])
    act_ref[...] = out

    # Only the last layer's result matters for the (constant-index) output block.
    @pl.when(l == pl.num_programs(0) - 1)
    def _():
        o_ref[...] = out.astype(o_ref.dtype)


def _pack_one_layer(p, w_dtype, num_heads):
    """PyTorch-layout params -> kernel layout: fused QKV (scale folded into Q), (in,out)
    bf16 weights, f32 biases / LN params."""
    (wq, wk, wv, bq, bk, bv, wo, bo, w1, b1, w2, b2, g1, be1, g2, be2) = p
    E = wq.shape[0]
    scale = 1.0 / math.sqrt(E // num_heads)
    wqkv = jnp.concatenate([wq.T * scale, wk.T, wv.T], axis=1).astype(w_dtype)  # (E, 3E)
    bqkv = jnp.concatenate([bq * scale, bk, bv], axis=1)                         # (1, 3E)
    return (wqkv, bqkv,
            wo.T.astype(w_dtype), bo,
            w1.T.astype(w_dtype), b1,
            w2.T.astype(w_dtype), b2,
            g1, be1, g2, be2)


def _pack_layer_params(layers_params, num_heads, w_dtype=jnp.bfloat16):
    per_layer = [_pack_one_layer(p, w_dtype, num_heads) for p in layers_params]
    return tuple(jnp.stack(col) for col in zip(*per_layer))   # each (L, ...)


def transformer_encoder_pallas(src_sne, layers_params, num_heads):
    """TransformerEncoder.forward with mask=None, key_padding_mask=None, norm=None.

    src_sne: (S, N, E) -- PyTorch layout.  Returns (S, N, E)."""
    # TODO(synk): for large S*N*E, rewrite the kernel to consume (S, N, E) directly and
    #             avoid these boundary transposes (negligible at these sizes).
    x = jnp.transpose(src_sne, (1, 0, 2))                    # -> (B, S, E)
    B, S, E = x.shape
    assert E % num_heads == 0
    packed = _pack_layer_params(layers_params, num_heads)
    L = packed[0].shape[0]
    FF = packed[4].shape[2]                                  # stacked w1: (L, E, FF)
    BS = B * S
    x2 = x.reshape(BS, E)

    def layer_spec(arr):
        shp = tuple(arr.shape)
        nrest = len(shp) - 1
        return pl.BlockSpec((None,) + shp[1:], lambda l, _n=nrest: (l,) + (0,) * _n)

    grid_spec = pltpu.PrefetchScalarGridSpec(
        num_scalar_prefetch=0,
        grid=(L,),
        in_specs=[pl.BlockSpec((BS, E), lambda l: (0, 0))] + [layer_spec(a) for a in packed],
        out_specs=pl.BlockSpec((BS, E), lambda l: (0, 0)),
        scratch_shapes=[pltpu.VMEM((BS, E), jnp.float32)],   # activation carried across layers
    )

    # ---- advisory cost estimate (lets XLA schedule boundary ops around the fused call) ----
    flops_per_layer = (
        2 * BS * E * 3 * E                                   # fused QKV
        + 2 * 2 * B * S * S * E                              # QK^T + PV (all heads)
        + 2 * BS * E * E                                     # out projection
        + 2 * 2 * BS * E * FF                                # FFN W1 + W2
    )
    param_bytes = sum(int(a.size) * a.dtype.itemsize for a in packed)
    cost = pl.CostEstimate(
        flops=L * flops_per_layer,
        transcendentals=L * num_heads * B * S * S,           # softmax exp
        bytes_accessed=2 * BS * E * 4 + param_bytes,
    )

    # ---- VMEM budget from the actual resident set (input + output + act scratch +
    #      double-buffered per-layer params + transient headroom), clamped for v7x/v6e ----
    act_bytes = BS * E * 4
    per_layer_param_bytes = sum(
        int(math.prod(a.shape[1:])) * a.dtype.itemsize for a in packed)
    vmem_budget = 4 * act_bytes + 2 * per_layer_param_bytes + 12 * act_bytes + (4 << 20)
    vmem_budget = min(max(vmem_budget, 16 << 20), 100 << 20)

    kernel = functools.partial(_encoder_stack_kernel,
                               num_heads=num_heads, batch=B, seq=S)
    out = pl.pallas_call(
        kernel,
        out_shape=jax.ShapeDtypeStruct((BS, E), src_sne.dtype),
        grid_spec=grid_spec,
        compiler_params=pltpu.CompilerParams(
            dimension_semantics=("arbitrary",),              # layers are sequential
            vmem_limit_bytes=vmem_budget,
        ),
        cost_estimate=cost,
        # TODO(synk): on v7x add a leading "parallel" batch-tile grid axis to use both
        #             TensorCores (no-op on v5e/v6e single-core chips).
    )(x2, *packed)
    return jnp.transpose(out.reshape(B, S, E), (1, 0, 2))    # -> (S, N, E)


# ---------------- pure-JAX reference (same bf16 matmul-input precision) ----------------
def _encoder_layer_ref(x, p, num_heads):
    (wq, wk, wv, bq, bk, bv, wo, bo, w1, b1, w2, b2, g1, be1, g2, be2) = p
    B, S, E = x.shape
    dh = E // num_heads
    bf = lambda a: a.astype(jnp.bfloat16)
    q = jnp.einsum('bse,fe->bsf', bf(x), bf(wq), preferred_element_type=jnp.float32) + bq
    k = jnp.einsum('bse,fe->bsf', bf(x), bf(wk), preferred_element_type=jnp.float32) + bk
    v = jnp.einsum('bse,fe->bsf', bf(x), bf(wv), preferred_element_type=jnp.float32) + bv
    ctx = []
    for h in range(num_heads):
        sl = slice(h * dh, (h + 1) * dh)
        qh = bf(q[:, :, sl] * (dh ** -0.5))
        kh = bf(k[:, :, sl])
        vh = bf(v[:, :, sl])
        s = jnp.einsum('bqd,bkd->bqk', qh, kh, preferred_element_type=jnp.float32)
        p_ = jax.nn.softmax(s, axis=-1)
        ctx.append(jnp.einsum('bqk,bkd->bqd', bf(p_), vh, preferred_element_type=jnp.float32))
    ctx = jnp.concatenate(ctx, axis=-1)
    attn = jnp.einsum('bse,fe->bsf', bf(ctx), bf(wo), preferred_element_type=jnp.float32) + bo
    h1 = _layer_norm(x + attn, g1, be1)
    f = jnp.einsum('bse,fe->bsf', bf(h1), bf(w1), preferred_element_type=jnp.float32) + b1
    f = jnp.maximum(f, 0.0)
    f = jnp.einsum('bsf,ef->bse', bf(f), bf(w2), preferred_element_type=jnp.float32) + b2
    return _layer_norm(h1 + f, g2, be2)


def transformer_encoder_ref(src_sne, layers_params, num_heads):
    x = jnp.transpose(src_sne, (1, 0, 2))
    for params in layers_params:
        x = _encoder_layer_ref(x, params, num_heads)
    return jnp.transpose(x, (1, 0, 2))


def init_layer_params(key, d_model, nhead, dim_ff):
    ks = jax.random.split(key, 8)
    std = 0.05
    wq = jax.random.normal(ks[0], (d_model, d_model), jnp.float32) * std
    wk = jax.random.normal(ks[1], (d_model, d_model), jnp.float32) * std
    wv = jax.random.normal(ks[2], (d_model, d_model), jnp.float32) * std
    wo = jax.random.normal(ks[3], (d_model, d_model), jnp.float32) * std
    w1 = jax.random.normal(ks[4], (dim_ff, d_model), jnp.float32) * std
    w2 = jax.random.normal(ks[5], (d_model, dim_ff), jnp.float32) * std
    bq = jax.random.normal(ks[6], (1, d_model), jnp.float32) * 0.01
    bk = jnp.zeros((1, d_model), jnp.float32)
    bv = jax.random.normal(ks[7], (1, d_model), jnp.float32) * 0.01
    bo = jnp.zeros((1, d_model), jnp.float32)
    b1 = jnp.zeros((1, dim_ff), jnp.float32)
    b2 = jnp.zeros((1, d_model), jnp.float32)
    g1 = jnp.ones((1, d_model), jnp.float32)
    be1 = jnp.zeros((1, d_model), jnp.float32)
    g2 = jnp.ones((1, d_model), jnp.float32)
    be2 = jnp.zeros((1, d_model), jnp.float32)
    return (wq, wk, wv, bq, bk, bv, wo, bo, w1, b1, w2, b2, g1, be1, g2, be2)


if __name__ == "__main__":
    # small shapes: seq=8, batch=2, d_model=32, nhead=4, dim_feedforward=64, num_layers=2
    S, N, E, H, FF, L = 8, 2, 32, 4, 64, 2

    root = jax.random.PRNGKey(0)
    k_src, *k_layers = jax.random.split(root, 1 + L)
    src = jax.random.normal(k_src, (S, N, E), jnp.float32)          # PyTorch (S, N, E) layout
    layers_params = [init_layer_params(k, E, H, FF) for k in k_layers]

    out = transformer_encoder_pallas(src, layers_params, num_heads=H)
    out = jax.block_until_ready(out)

    ref = transformer_encoder_ref(src, layers_params, num_heads=H)
    assert out.shape == (S, N, E)
    assert jnp.allclose(out, ref, atol=2e-2, rtol=2e-2), "mismatch vs. pure-JAX reference"

    # TODO(synk): src_mask / src_key_padding_mask, training-mode dropout and the optional final
    #             `norm` are not modeled (forward is used with mask=None, norm=None, eval mode).
    print("KERNEL_OK")
</pallas_src>

<mosaic_0001>
module attributes {stable_mosaic.version = 11 : i64} {
  func.func @_encoder_stack_kernel(%arg0: i32, %arg1: memref<16x32xf32, #tpu.memory_space<vmem>>, %arg2: memref<1x32x96xbf16, #tpu.memory_space<vmem>>, %arg3: memref<1x1x96xf32, #tpu.memory_space<vmem>>, %arg4: memref<1x32x32xbf16, #tpu.memory_space<vmem>>, %arg5: memref<1x1x32xf32, #tpu.memory_space<vmem>>, %arg6: memref<1x32x64xbf16, #tpu.memory_space<vmem>>, %arg7: memref<1x1x64xf32, #tpu.memory_space<vmem>>, %arg8: memref<1x64x32xbf16, #tpu.memory_space<vmem>>, %arg9: memref<1x1x32xf32, #tpu.memory_space<vmem>>, %arg10: memref<1x1x32xf32, #tpu.memory_space<vmem>>, %arg11: memref<1x1x32xf32, #tpu.memory_space<vmem>>, %arg12: memref<1x1x32xf32, #tpu.memory_space<vmem>>, %arg13: memref<1x1x32xf32, #tpu.memory_space<vmem>>, %arg14: memref<16x32xf32, #tpu.memory_space<vmem>>, %arg15: memref<16x32xf32, #tpu.memory_space<vmem>>) attributes {dimension_semantics = [#tpu.dimension_semantics<arbitrary>], iteration_bounds = array<i64: 2>, scalar_prefetch = 0 : i64, scratch_operands = 1 : i64, tpu.core_type = #tpu.core_type<tc>, window_params = [{pipeline_mode = #tpu.pipeline_mode<synchronous>, transform_indices = @transform_0, window_bounds = array<i64: 16, 32>}, {transform_indices = @transform_1, window_bounds = array<i64: 1, 32, 96>}, {transform_indices = @transform_2, window_bounds = array<i64: 1, 1, 96>}, {transform_indices = @transform_3, window_bounds = array<i64: 1, 32, 32>}, {transform_indices = @transform_4, window_bounds = array<i64: 1, 1, 32>}, {transform_indices = @transform_5, window_bounds = array<i64: 1, 32, 64>}, {transform_indices = @transform_6, window_bounds = array<i64: 1, 1, 64>}, {transform_indices = @transform_7, window_bounds = array<i64: 1, 64, 32>}, {transform_indices = @transform_8, window_bounds = array<i64: 1, 1, 32>}, {transform_indices = @transform_9, window_bounds = array<i64: 1, 1, 32>}, {transform_indices = @transform_10, window_bounds = array<i64: 1, 1, 32>}, {transform_indices = @transform_11, window_bounds = array<i64: 1, 1, 32>}, {transform_indices = @transform_12, window_bounds = array<i64: 1, 1, 32>}, {pipeline_mode = #tpu.pipeline_mode<synchronous>, transform_indices = @transform_13, window_bounds = array<i64: 16, 32>}]} {
    %c0_i32 = arith.constant 0 : i32
    %0 = arith.cmpi eq, %arg0, %c0_i32 : i32
    %1 = arith.extui %0 : i1 to i32
    %c0_i32_0 = arith.constant 0 : i32
    %2 = arith.cmpi ne, %1, %c0_i32_0 : i32
    scf.if %2 {
      %c0_71 = arith.constant 0 : index
      %c0_72 = arith.constant 0 : index
      %180 = vector.load %arg1[%c0_71, %c0_72] : memref<16x32xf32, #tpu.memory_space<vmem>>, vector<16x32xf32>
      %c0_73 = arith.constant 0 : index
      %c0_74 = arith.constant 0 : index
      %181 = vector.load %arg15[%c0_73, %c0_74] : memref<16x32xf32, #tpu.memory_space<vmem>>, vector<16x32xf32>
      tpu.vector_store %arg15[%c0_73, %c0_74], %180 {strides = array<i32>} : memref<16x32xf32, #tpu.memory_space<vmem>>, vector<16x32xf32>,
    } else {
    }
    %c0 = arith.constant 0 : index
    %c0_1 = arith.constant 0 : index
    %3 = vector.load %arg15[%c0, %c0_1] : memref<16x32xf32, #tpu.memory_space<vmem>>, vector<16x32xf32>
    %4 = arith.truncf %3 : vector<16x32xf32> to vector<16x32xbf16>
    %c0_2 = arith.constant 0 : index
    %c0_3 = arith.constant 0 : index
    %c0_4 = arith.constant 0 : index
    %5 = vector.load %arg2[%c0_2, %c0_3, %c0_4] : memref<1x32x96xbf16, #tpu.memory_space<vmem>>, vector<1x32x96xbf16>
    %6 = vector.shape_cast %5 : vector<1x32x96xbf16> to vector<32x96xbf16>
    %cst = arith.constant dense<0.000000e+00> : vector<16x96xf32>
    %7 = tpu.matmul %4, %6, %cst {dimension_numbers = #tpu.dot_dimension_numbers<[1], [0], [0], [1], [0, 0, 1, 1], [], []>} : vector<16x32xbf16>, vector<32x96xbf16>, vector<16x96xf32> -> vector<16x96xf32>
    %c0_5 = arith.constant 0 : index
    %c0_6 = arith.constant 0 : index
    %c0_7 = arith.constant 0 : index
    %8 = vector.load %arg3[%c0_5, %c0_6, %c0_7] : memref<1x1x96xf32, #tpu.memory_space<vmem>>, vector<1x1x96xf32>
    %9 = vector.shape_cast %8 : vector<1x1x96xf32> to vector<1x96xf32>
    %10 = vector.broadcast %9 : vector<1x96xf32> to vector<16x96xf32>
    %11 = arith.addf %7, %10 : vector<16x96xf32>
    %12 = vector.extract_strided_slice %11 {offsets = [0, 0], sizes = [16, 32], strides = [1, 1]} : vector<16x96xf32> to vector<16x32xf32>
    %13 = vector.shape_cast %12 : vector<16x32xf32> to vector<2x8x32xf32>
    %14 = vector.extract_strided_slice %11 {offsets = [0, 32], sizes = [16, 32], strides = [1, 1]} : vector<16x96xf32> to vector<16x32xf32>
    %15 = vector.shape_cast %14 : vector<16x32xf32> to vector<2x8x32xf32>
    %16 = vector.extract_strided_slice %11 {offsets = [0, 64], sizes = [16, 32], strides = [1, 1]} : vector<16x96xf32> to vector<16x32xf32>
    %17 = vector.shape_cast %16 : vector<16x32xf32> to vector<2x8x32xf32>
    %18 = vector.extract_strided_slice %13 {offsets = [0, 0, 0], sizes = [2, 8, 8], strides = [1, 1, 1]} : vector<2x8x32xf32> to vector<2x8x8xf32>
    %19 = arith.truncf %18 : vector<2x8x8xf32> to vector<2x8x8xbf16>
    %20 = vector.extract_strided_slice %15 {offsets = [0, 0, 0], sizes = [2, 8, 8], strides = [1, 1, 1]} : vector<2x8x32xf32> to vector<2x8x8xf32>
    %21 = arith.truncf %20 : vector<2x8x8xf32> to vector<2x8x8xbf16>
    %22 = vector.extract_strided_slice %17 {offsets = [0, 0, 0], sizes = [2, 8, 8], strides = [1, 1, 1]} : vector<2x8x32xf32> to vector<2x8x8xf32>
    %23 = arith.truncf %22 : vector<2x8x8xf32> to vector<2x8x8xbf16>
    "tpu.trace_start"() <{level = 10 : i32, message = "bqd,bkd->bqk"}> : () -> ()
    %cst_8 = arith.constant dense<0.000000e+00> : vector<2x8x8xf32>
    %24 = tpu.matmul %19, %21, %cst_8 {dimension_numbers = #tpu.dot_dimension_numbers<[2], [2], [1], [1], [0, 0, 0, 1, 1, 1], [0], [0]>} : vector<2x8x8xbf16>, vector<2x8x8xbf16>, vector<2x8x8xf32> -> vector<2x8x8xf32>
    "tpu.trace_stop"() : () -> ()
    %cst_9 = arith.constant dense<0xFF800000> : vector<2x8xf32>
    %25 = vector.multi_reduction <maximumf>, %24, %cst_9 [2] : vector<2x8x8xf32> to vector<2x8xf32>
    %26 = vector.shape_cast %25 : vector<2x8xf32> to vector<2x8x1xf32>
    %27 = vector.broadcast %26 : vector<2x8x1xf32> to vector<2x8x8xf32>
    %28 = arith.subf %24, %27 : vector<2x8x8xf32>
    %29 = math.exp %28 : vector<2x8x8xf32>
    %cst_10 = arith.constant dense<0.000000e+00> : vector<2x8xf32>
    %30 = vector.multi_reduction <add>, %29, %cst_10 [2] : vector<2x8x8xf32> to vector<2x8xf32>
    %31 = vector.shape_cast %30 : vector<2x8xf32> to vector<2x8x1xf32>
    %32 = tpu.reciprocal %31 {approx = true} : vector<2x8x1xf32> -> vector<2x8x1xf32>
    %33 = vector.broadcast %32 : vector<2x8x1xf32> to vector<2x8x8xf32>
    %34 = arith.mulf %29, %33 : vector<2x8x8xf32>
    %35 = arith.truncf %34 : vector<2x8x8xf32> to vector<2x8x8xbf16>
    "tpu.trace_start"() <{level = 10 : i32, message = "bqk,bkd->bqd"}> : () -> ()
    %cst_11 = arith.constant dense<0.000000e+00> : vector<2x8x8xf32>
    %36 = tpu.matmul %35, %23, %cst_11 {dimension_numbers = #tpu.dot_dimension_numbers<[2], [1], [1], [2], [0, 0, 0, 1, 1, 2], [0], [0]>} : vector<2x8x8xbf16>, vector<2x8x8xbf16>, vector<2x8x8xf32> -> vector<2x8x8xf32>
    "tpu.trace_stop"() : () -> ()
    %37 = vector.extract_strided_slice %13 {offsets = [0, 0, 8], sizes = [2, 8, 8], strides = [1, 1, 1]} : vector<2x8x32xf32> to vector<2x8x8xf32>
    %38 = arith.truncf %37 : vector<2x8x8xf32> to vector<2x8x8xbf16>
    %39 = vector.extract_strided_slice %15 {offsets = [0, 0, 8], sizes = [2, 8, 8], strides = [1, 1, 1]} : vector<2x8x32xf32> to vector<2x8x8xf32>
    %40 = arith.truncf %39 : vector<2x8x8xf32> to vector<2x8x8xbf16>
    %41 = vector.extract_strided_slice %17 {offsets = [0, 0, 8], sizes = [2, 8, 8], strides = [1, 1, 1]} : vector<2x8x32xf32> to vector<2x8x8xf32>
    %42 = arith.truncf %41 : vector<2x8x8xf32> to vector<2x8x8xbf16>
    "tpu.trace_start"() <{level = 10 : i32, message = "bqd,bkd->bqk"}> : () -> ()
    %cst_12 = arith.constant dense<0.000000e+00> : vector<2x8x8xf32>
    %43 = tpu.matmul %38, %40, %cst_12 {dimension_numbers = #tpu.dot_dimension_numbers<[2], [2], [1], [1], [0, 0, 0, 1, 1, 1], [0], [0]>} : vector<2x8x8xbf16>, vector<2x8x8xbf16>, vector<2x8x8xf32> -> vector<2x8x8xf32>
    "tpu.trace_stop"() : () -> ()
    %cst_13 = arith.constant dense<0xFF800000> : vector<2x8xf32>
    %44 = vector.multi_reduction <maximumf>, %43, %cst_13 [2] : vector<2x8x8xf32> to vector<2x8xf32>
    %45 = vector.shape_cast %44 : vector<2x8xf32> to vector<2x8x1xf32>
    %46 = vector.broadcast %45 : vector<2x8x1xf32> to vector<2x8x8xf32>
    %47 = arith.subf %43, %46 : vector<2x8x8xf32>
    %48 = math.exp %47 : vector<2x8x8xf32>
    %cst_14 = arith.constant dense<0.000000e+00> : vector<2x8xf32>
    %49 = vector.multi_reduction <add>, %48, %cst_14 [2] : vector<2x8x8xf32> to vector<2x8xf32>
    %50 = vector.shape_cast %49 : vector<2x8xf32> to vector<2x8x1xf32>
    %51 = tpu.reciprocal %50 {approx = true} : vector<2x8x1xf32> -> vector<2x8x1xf32>
    %52 = vector.broadcast %51 : vector<2x8x1xf32> to vector<2x8x8xf32>
    %53 = arith.mulf %48, %52 : vector<2x8x8xf32>
    %54 = arith.truncf %53 : vector<2x8x8xf32> to vector<2x8x8xbf16>
    "tpu.trace_start"() <{level = 10 : i32, message = "bqk,bkd->bqd"}> : () -> ()
    %cst_15 = arith.constant dense<0.000000e+00> : vector<2x8x8xf32>
    %55 = tpu.matmul %54, %42, %cst_15 {dimension_numbers = #tpu.dot_dimension_numbers<[2], [1], [1], [2], [0, 0, 0, 1, 1, 2], [0], [0]>} : vector<2x8x8xbf16>, vector<2x8x8xbf16>, vector<2x8x8xf32> -> vector<2x8x8xf32>
    "tpu.trace_stop"() : () -> ()
    %56 = vector.extract_strided_slice %13 {offsets = [0, 0, 16], sizes = [2, 8, 8], strides = [1, 1, 1]} : vector<2x8x32xf32> to vector<2x8x8xf32>
    %57 = arith.truncf %56 : vector<2x8x8xf32> to vector<2x8x8xbf16>
    %58 = vector.extract_strided_slice %15 {offsets = [0, 0, 16], sizes = [2, 8, 8], strides = [1, 1, 1]} : vector<2x8x32xf32> to vector<2x8x8xf32>
    %59 = arith.truncf %58 : vector<2x8x8xf32> to vector<2x8x8xbf16>
    %60 = vector.extract_strided_slice %17 {offsets = [0, 0, 16], sizes = [2, 8, 8], strides = [1, 1, 1]} : vector<2x8x32xf32> to vector<2x8x8xf32>
    %61 = arith.truncf %60 : vector<2x8x8xf32> to vector<2x8x8xbf16>
    "tpu.trace_start"() <{level = 10 : i32, message = "bqd,bkd->bqk"}> : () -> ()
    %cst_16 = arith.constant dense<0.000000e+00> : vector<2x8x8xf32>
    %62 = tpu.matmul %57, %59, %cst_16 {dimension_numbers = #tpu.dot_dimension_numbers<[2], [2], [1], [1], [0, 0, 0, 1, 1, 1], [0], [0]>} : vector<2x8x8xbf16>, vector<2x8x8xbf16>, vector<2x8x8xf32> -> vector<2x8x8xf32>
    "tpu.trace_stop"() : () -> ()
    %cst_17 = arith.constant dense<0xFF800000> : vector<2x8xf32>
    %63 = vector.multi_reduction <maximumf>, %62, %cst_17 [2] : vector<2x8x8xf32> to vector<2x8xf32>
    %64 = vector.shape_cast %63 : vector<2x8xf32> to vector<2x8x1xf32>
    %65 = vector.broadcast %64 : vector<2x8x1xf32> to vector<2x8x8xf32>
    %66 = arith.subf %62, %65 : vector<2x8x8xf32>
    %67 = math.exp %66 : vector<2x8x8xf32>
    %cst_18 = arith.constant dense<0.000000e+00> : vector<2x8xf32>
    %68 = vector.multi_reduction <add>, %67, %cst_18 [2] : vector<2x8x8xf32> to vector<2x8xf32>
    %69 = vector.shape_cast %68 : vector<2x8xf32> to vector<2x8x1xf32>
    %70 = tpu.reciprocal %69 {approx = true} : vector<2x8x1xf32> -> vector<2x8x1xf32>
    %71 = vector.broadcast %70 : vector<2x8x1xf32> to vector<2x8x8xf32>
    %72 = arith.mulf %67, %71 : vector<2x8x8xf32>
    %73 = arith.truncf %72 : vector<2x8x8xf32> to vector<2x8x8xbf16>
    "tpu.trace_start"() <{level = 10 : i32, message = "bqk,bkd->bqd"}> : () -> ()
    %cst_19 = arith.constant dense<0.000000e+00> : vector<2x8x8xf32>
    %74 = tpu.matmul %73, %61, %cst_19 {dimension_numbers = #tpu.dot_dimension_numbers<[2], [1], [1], [2], [0, 0, 0, 1, 1, 2], [0], [0]>} : vector<2x8x8xbf16>, vector<2x8x8xbf16>, vector<2x8x8xf32> -> vector<2x8x8xf32>
    "tpu.trace_stop"() : () -> ()
    %75 = vector.extract_strided_slice %13 {offsets = [0, 0, 24], sizes = [2, 8, 8], strides = [1, 1, 1]} : vector<2x8x32xf32> to vector<2x8x8xf32>
    %76 = arith.truncf %75 : vector<2x8x8xf32> to vector<2x8x8xbf16>
    %77 = vector.extract_strided_slice %15 {offsets = [0, 0, 24], sizes = [2, 8, 8], strides = [1, 1, 1]} : vector<2x8x32xf32> to vector<2x8x8xf32>
    %78 = arith.truncf %77 : vector<2x8x8xf32> to vector<2x8x8xbf16>
    %79 = vector.extract_strided_slice %17 {offsets = [0, 0, 24], sizes = [2, 8, 8], strides = [1, 1, 1]} : vector<2x8x32xf32> to vector<2x8x8xf32>
    %80 = arith.truncf %79 : vector<2x8x8xf32> to vector<2x8x8xbf16>
    "tpu.trace_start"() <{level = 10 : i32, message = "bqd,bkd->bqk"}> : () -> ()
    %cst_20 = arith.constant dense<0.000000e+00> : vector<2x8x8xf32>
    %81 = tpu.matmul %76, %78, %cst_20 {dimension_numbers = #tpu.dot_dimension_numbers<[2], [2], [1], [1], [0, 0, 0, 1, 1, 1], [0], [0]>} : vector<2x8x8xbf16>, vector<2x8x8xbf16>, vector<2x8x8xf32> -> vector<2x8x8xf32>
    "tpu.trace_stop"() : () -> ()
    %cst_21 = arith.constant dense<0xFF800000> : vector<2x8xf32>
    %82 = vector.multi_reduction <maximumf>, %81, %cst_21 [2] : vector<2x8x8xf32> to vector<2x8xf32>
    %83 = vector.shape_cast %82 : vector<2x8xf32> to vector<2x8x1xf32>
    %84 = vector.broadcast %83 : vector<2x8x1xf32> to vector<2x8x8xf32>
    %85 = arith.subf %81, %84 : vector<2x8x8xf32>
    %86 = math.exp %85 : vector<2x8x8xf32>
    %cst_22 = arith.constant dense<0.000000e+00> : vector<2x8xf32>
    %87 = vector.multi_reduction <add>, %86, %cst_22 [2] : vector<2x8x8xf32> to vector<2x8xf32>
    %88 = vector.shape_cast %87 : vector<2x8xf32> to vector<2x8x1xf32>
    %89 = tpu.reciprocal %88 {approx = true} : vector<2x8x1xf32> -> vector<2x8x1xf32>
    %90 = vector.broadcast %89 : vector<2x8x1xf32> to vector<2x8x8xf32>
    %91 = arith.mulf %86, %90 : vector<2x8x8xf32>
    %92 = arith.truncf %91 : vector<2x8x8xf32> to vector<2x8x8xbf16>
    "tpu.trace_start"() <{level = 10 : i32, message = "bqk,bkd->bqd"}> : () -> ()
    %cst_23 = arith.constant dense<0.000000e+00> : vector<2x8x8xf32>
    %93 = tpu.matmul %92, %80, %cst_23 {dimension_numbers = #tpu.dot_dimension_numbers<[2], [1], [1], [2], [0, 0, 0, 1, 1, 2], [0], [0]>} : vector<2x8x8xbf16>, vector<2x8x8xbf16>, vector<2x8x8xf32> -> vector<2x8x8xf32>
    "tpu.trace_stop"() : () -> ()
    %94 = tpu.concatenate %36, %55, %74, %93 in 2 : vector<2x8x8xf32>, vector<2x8x8xf32>, vector<2x8x8xf32>, vector<2x8x8xf32> -> vector<2x8x32xf32>
    %95 = vector.shape_cast %94 : vector<2x8x32xf32> to vector<16x32xf32>
    %96 = arith.truncf %95 : vector<16x32xf32> to vector<16x32xbf16>
    %c0_24 = arith.constant 0 : index
    %c0_25 = arith.constant 0 : index
    %c0_26 = arith.constant 0 : index
    %97 = vector.load %arg4[%c0_24, %c0_25, %c0_26] : memref<1x32x32xbf16, #tpu.memory_space<vmem>>, vector<1x32x32xbf16>
    %98 = vector.shape_cast %97 : vector<1x32x32xbf16> to vector<32x32xbf16>
    %cst_27 = arith.constant dense<0.000000e+00> : vector<16x32xf32>
    %99 = tpu.matmul %96, %98, %cst_27 {dimension_numbers = #tpu.dot_dimension_numbers<[1], [0], [0], [1], [0, 0, 1, 1], [], []>} : vector<16x32xbf16>, vector<32x32xbf16>, vector<16x32xf32> -> vector<16x32xf32>
    %c0_28 = arith.constant 0 : index
    %c0_29 = arith.constant 0 : index
    %c0_30 = arith.constant 0 : index
    %100 = vector.load %arg5[%c0_28, %c0_29, %c0_30] : memref<1x1x32xf32, #tpu.memory_space<vmem>>, vector<1x1x32xf32>
    %101 = vector.shape_cast %100 : vector<1x1x32xf32> to vector<1x32xf32>
    %102 = vector.broadcast %101 : vector<1x32xf32> to vector<16x32xf32>
    %103 = arith.addf %99, %102 : vector<16x32xf32>
    %104 = arith.addf %3, %103 : vector<16x32xf32>
    %c0_31 = arith.constant 0 : index
    %c0_32 = arith.constant 0 : index
    %c0_33 = arith.constant 0 : index
    %105 = vector.load %arg10[%c0_31, %c0_32, %c0_33] : memref<1x1x32xf32, #tpu.memory_space<vmem>>, vector<1x1x32xf32>
    %106 = vector.shape_cast %105 : vector<1x1x32xf32> to vector<1x32xf32>
    %c0_34 = arith.constant 0 : index
    %c0_35 = arith.constant 0 : index
    %c0_36 = arith.constant 0 : index
    %107 = vector.load %arg11[%c0_34, %c0_35, %c0_36] : memref<1x1x32xf32, #tpu.memory_space<vmem>>, vector<1x1x32xf32>
    %108 = vector.shape_cast %107 : vector<1x1x32xf32> to vector<1x32xf32>
    %cst_37 = arith.constant dense<0.000000e+00> : vector<16xf32>
    %109 = vector.multi_reduction <add>, %104, %cst_37 [1] : vector<16x32xf32> to vector<16xf32>
    %110 = vector.shape_cast %109 : vector<16xf32> to vector<16x1xf32>
    %cst_38 = arith.constant 3.200000e+01 : f32
    %111 = vector.broadcast %cst_38 : f32 to vector<16x1xf32>
    %112 = arith.divf %110, %111 : vector<16x1xf32>
    %113 = vector.broadcast %112 : vector<16x1xf32> to vector<16x32xf32>
    %114 = arith.subf %104, %113 : vector<16x32xf32>
    %115 = arith.mulf %114, %114 : vector<16x32xf32>
    %cst_39 = arith.constant dense<0.000000e+00> : vector<16xf32>
    %116 = vector.multi_reduction <add>, %115, %cst_39 [1] : vector<16x32xf32> to vector<16xf32>
    %117 = vector.shape_cast %116 : vector<16xf32> to vector<16x1xf32>
    %cst_40 = arith.constant 3.200000e+01 : f32
    %118 = vector.broadcast %cst_40 : f32 to vector<16x1xf32>
    %119 = arith.divf %117, %118 : vector<16x1xf32>
    %120 = vector.broadcast %112 : vector<16x1xf32> to vector<16x32xf32>
    %121 = arith.subf %104, %120 : vector<16x32xf32>
    %cst_41 = arith.constant 9.99999974E-6 : f32
    %122 = vector.broadcast %cst_41 : f32 to vector<16x1xf32>
    %123 = arith.addf %119, %122 : vector<16x1xf32>
    %124 = math.rsqrt %123 : vector<16x1xf32>
    %125 = vector.broadcast %124 : vector<16x1xf32> to vector<16x32xf32>
    %126 = vector.broadcast %106 : vector<1x32xf32> to vector<16x32xf32>
    %127 = arith.mulf %125, %126 : vector<16x32xf32>
    %128 = arith.mulf %121, %127 : vector<16x32xf32>
    %129 = vector.broadcast %108 : vector<1x32xf32> to vector<16x32xf32>
    %130 = arith.addf %128, %129 : vector<16x32xf32>
    %131 = arith.truncf %130 : vector<16x32xf32> to vector<16x32xbf16>
    %c0_42 = arith.constant 0 : index
    %c0_43 = arith.constant 0 : index
    %c0_44 = arith.constant 0 : index
    %132 = vector.load %arg6[%c0_42, %c0_43, %c0_44] : memref<1x32x64xbf16, #tpu.memory_space<vmem>>, vector<1x32x64xbf16>
    %133 = vector.shape_cast %132 : vector<1x32x64xbf16> to vector<32x64xbf16>
    %cst_45 = arith.constant dense<0.000000e+00> : vector<16x64xf32>
    %134 = tpu.matmul %131, %133, %cst_45 {dimension_numbers = #tpu.dot_dimension_numbers<[1], [0], [0], [1], [0, 0, 1, 1], [], []>} : vector<16x32xbf16>, vector<32x64xbf16>, vector<16x64xf32> -> vector<16x64xf32>
    %c0_46 = arith.constant 0 : index
    %c0_47 = arith.constant 0 : index
    %c0_48 = arith.constant 0 : index
    %135 = vector.load %arg7[%c0_46, %c0_47, %c0_48] : memref<1x1x64xf32, #tpu.memory_space<vmem>>, vector<1x1x64xf32>
    %136 = vector.shape_cast %135 : vector<1x1x64xf32> to vector<1x64xf32>
    %137 = vector.broadcast %136 : vector<1x64xf32> to vector<16x64xf32>
    %138 = arith.addf %134, %137 : vector<16x64xf32>
    %cst_49 = arith.constant 0.000000e+00 : f32
    %139 = vector.broadcast %cst_49 : f32 to vector<16x64xf32>
    %140 = arith.maximumf %138, %139 : vector<16x64xf32>
    %141 = arith.truncf %140 : vector<16x64xf32> to vector<16x64xbf16>
    %c0_50 = arith.constant 0 : index
    %c0_51 = arith.constant 0 : index
    %c0_52 = arith.constant 0 : index
    %142 = vector.load %arg8[%c0_50, %c0_51, %c0_52] : memref<1x64x32xbf16, #tpu.memory_space<vmem>>, vector<1x64x32xbf16>
    %143 = vector.shape_cast %142 : vector<1x64x32xbf16> to vector<64x32xbf16>
    %cst_53 = arith.constant dense<0.000000e+00> : vector<16x32xf32>
    %144 = tpu.matmul %141, %143, %cst_53 {dimension_numbers = #tpu.dot_dimension_numbers<[1], [0], [0], [1], [0, 0, 1, 1], [], []>} : vector<16x64xbf16>, vector<64x32xbf16>, vector<16x32xf32> -> vector<16x32xf32>
    %c0_54 = arith.constant 0 : index
    %c0_55 = arith.constant 0 : index
    %c0_56 = arith.constant 0 : index
    %145 = vector.load %arg9[%c0_54, %c0_55, %c0_56] : memref<1x1x32xf32, #tpu.memory_space<vmem>>, vector<1x1x32xf32>
    %146 = vector.shape_cast %145 : vector<1x1x32xf32> to vector<1x32xf32>
    %147 = vector.broadcast %146 : vector<1x32xf32> to vector<16x32xf32>
    %148 = arith.addf %144, %147 : vector<16x32xf32>
    %149 = arith.addf %130, %148 : vector<16x32xf32>
    %c0_57 = arith.constant 0 : index
    %c0_58 = arith.constant 0 : index
    %c0_59 = arith.constant 0 : index
    %150 = vector.load %arg12[%c0_57, %c0_58, %c0_59] : memref<1x1x32xf32, #tpu.memory_space<vmem>>, vector<1x1x32xf32>
    %151 = vector.shape_cast %150 : vector<1x1x32xf32> to vector<1x32xf32>
    %c0_60 = arith.constant 0 : index
    %c0_61 = arith.constant 0 : index
    %c0_62 = arith.constant 0 : index
    %152 = vector.load %arg13[%c0_60, %c0_61, %c0_62] : memref<1x1x32xf32, #tpu.memory_space<vmem>>, vector<1x1x32xf32>
    %153 = vector.shape_cast %152 : vector<1x1x32xf32> to vector<1x32xf32>
    %cst_63 = arith.constant dense<0.000000e+00> : vector<16xf32>
    %154 = vector.multi_reduction <add>, %149, %cst_63 [1] : vector<16x32xf32> to vector<16xf32>
    %155 = vector.shape_cast %154 : vector<16xf32> to vector<16x1xf32>
    %cst_64 = arith.constant 3.200000e+01 : f32
    %156 = vector.broadcast %cst_64 : f32 to vector<16x1xf32>
    %157 = arith.divf %155, %156 : vector<16x1xf32>
    %158 = vector.broadcast %157 : vector<16x1xf32> to vector<16x32xf32>
    %159 = arith.subf %149, %158 : vector<16x32xf32>
    %160 = arith.mulf %159, %159 : vector<16x32xf32>
    %cst_65 = arith.constant dense<0.000000e+00> : vector<16xf32>
    %161 = vector.multi_reduction <add>, %160, %cst_65 [1] : vector<16x32xf32> to vector<16xf32>
    %162 = vector.shape_cast %161 : vector<16xf32> to vector<16x1xf32>
    %cst_66 = arith.constant 3.200000e+01 : f32
    %163 = vector.broadcast %cst_66 : f32 to vector<16x1xf32>
    %164 = arith.divf %162, %163 : vector<16x1xf32>
    %165 = vector.broadcast %157 : vector<16x1xf32> to vector<16x32xf32>
    %166 = arith.subf %149, %165 : vector<16x32xf32>
    %cst_67 = arith.constant 9.99999974E-6 : f32
    %167 = vector.broadcast %cst_67 : f32 to vector<16x1xf32>
    %168 = arith.addf %164, %167 : vector<16x1xf32>
    %169 = math.rsqrt %168 : vector<16x1xf32>
    %170 = vector.broadcast %169 : vector<16x1xf32> to vector<16x32xf32>
    %171 = vector.broadcast %151 : vector<1x32xf32> to vector<16x32xf32>
    %172 = arith.mulf %170, %171 : vector<16x32xf32>
    %173 = arith.mulf %166, %172 : vector<16x32xf32>
    %174 = vector.broadcast %153 : vector<1x32xf32> to vector<16x32xf32>
    %175 = arith.addf %173, %174 : vector<16x32xf32>
    %c0_68 = arith.constant 0 : index
    %c0_69 = arith.constant 0 : index
    %176 = vector.load %arg15[%c0_68, %c0_69] : memref<16x32xf32, #tpu.memory_space<vmem>>, vector<16x32xf32>
    tpu.vector_store %arg15[%c0_68, %c0_69], %175 {strides = array<i32>} : memref<16x32xf32, #tpu.memory_space<vmem>>, vector<16x32xf32>,
    %c1_i32 = arith.constant 1 : i32
    %177 = arith.cmpi eq, %arg0, %c1_i32 : i32
    %178 = arith.extui %177 : i1 to i32
    %c0_i32_70 = arith.constant 0 : i32
    %179 = arith.cmpi ne, %178, %c0_i32_70 : i32
    scf.if %179 {
      %c0_71 = arith.constant 0 : index
      %c0_72 = arith.constant 0 : index
      %180 = vector.load %arg14[%c0_71, %c0_72] : memref<16x32xf32, #tpu.memory_space<vmem>>, vector<16x32xf32>
      tpu.vector_store %arg14[%c0_71, %c0_72], %175 {strides = array<i32>} : memref<16x32xf32, #tpu.memory_space<vmem>>, vector<16x32xf32>,
    } else {
    }
    return
  }
  func.func @transform_0(%arg0: i32) -> (i32, i32) {
    %c0_i32 = arith.constant 0 : i32
    %c0_i32_0 = arith.constant 0 : i32
    %c0_i32_1 = arith.constant 0 : i32
    return %c0_i32, %c0_i32_0 : i32, i32
  }
  func.func @transform_1(%arg0: i32) -> (i32, i32, i32) {
    %c0_i32 = arith.constant 0 : i32
    %c0_i32_0 = arith.constant 0 : i32
    %c0_i32_1 = arith.constant 0 : i32
    return %arg0, %c0_i32, %c0_i32_0 : i32, i32, i32
  }
  func.func @transform_2(%arg0: i32) -> (i32, i32, i32) {
    %c0_i32 = arith.constant 0 : i32
    %c0_i32_0 = arith.constant 0 : i32
    %c0_i32_1 = arith.constant 0 : i32
    return %arg0, %c0_i32, %c0_i32_0 : i32, i32, i32
  }
  func.func @transform_3(%arg0: i32) -> (i32, i32, i32) {
    %c0_i32 = arith.constant 0 : i32
    %c0_i32_0 = arith.constant 0 : i32
    %c0_i32_1 = arith.constant 0 : i32
    return %arg0, %c0_i32, %c0_i32_0 : i32, i32, i32
  }
  func.func @transform_4(%arg0: i32) -> (i32, i32, i32) {
    %c0_i32 = arith.constant 0 : i32
    %c0_i32_0 = arith.constant 0 : i32
    %c0_i32_1 = arith.constant 0 : i32
    return %arg0, %c0_i32, %c0_i32_0 : i32, i32, i32
  }
  func.func @transform_5(%arg0: i32) -> (i32, i32, i32) {
    %c0_i32 = arith.constant 0 : i32
    %c0_i32_0 = arith.constant 0 : i32
    %c0_i32_1 = arith.constant 0 : i32
    return %arg0, %c0_i32, %c0_i32_0 : i32, i32, i32
  }
  func.func @transform_6(%arg0: i32) -> (i32, i32, i32) {
    %c0_i32 = arith.constant 0 : i32
    %c0_i32_0 = arith.constant 0 : i32
    %c0_i32_1 = arith.constant 0 : i32
    return %arg0, %c0_i32, %c0_i32_0 : i32, i32, i32
  }
  func.func @transform_7(%arg0: i32) -> (i32, i32, i32) {
    %c0_i32 = arith.constant 0 : i32
    %c0_i32_0 = arith.constant 0 : i32
    %c0_i32_1 = arith.constant 0 : i32
    return %arg0, %c0_i32, %c0_i32_0 : i32, i32, i32
  }
  func.func @transform_8(%arg0: i32) -> (i32, i32, i32) {
    %c0_i32 = arith.constant 0 : i32
    %c0_i32_0 = arith.constant 0 : i32
    %c0_i32_1 = arith.constant 0 : i32
    return %arg0, %c0_i32, %c0_i32_0 : i32, i32, i32
  }
  func.func @transform_9(%arg0: i32) -> (i32, i32, i32) {
    %c0_i32 = arith.constant 0 : i32
    %c0_i32_0 = arith.constant 0 : i32
    %c0_i32_1 = arith.constant 0 : i32
    return %arg0, %c0_i32, %c0_i32_0 : i32, i32, i32
  }
  func.func @transform_10(%arg0: i32) -> (i32, i32, i32) {
    %c0_i32 = arith.constant 0 : i32
    %c0_i32_0 = arith.constant 0 : i32
    %c0_i32_1 = arith.constant 0 : i32
    return %arg0, %c0_i32, %c0_i32_0 : i32, i32, i32
  }
  func.func @transform_11(%arg0: i32) -> (i32, i32, i32) {
    %c0_i32 = arith.constant 0 : i32
    %c0_i32_0 = arith.constant 0 : i32
    %c0_i32_1 = arith.constant 0 : i32
    return %arg0, %c0_i32, %c0_i32_0 : i32, i32, i32
  }
  func.func @transform_12(%arg0: i32) -> (i32, i32, i32) {
    %c0_i32 = arith.constant 0 : i32
    %c0_i32_0 = arith.constant 0 : i32
    %c0_i32_1 = arith.constant 0 : i32
    return %arg0, %c0_i32, %c0_i32_0 : i32, i32, i32
  }
  func.func @transform_13(%arg0: i32) -> (i32, i32) {
    %c0_i32 = arith.constant 0 : i32
    %c0_i32_0 = arith.constant 0 : i32
    %c0_i32_1 = arith.constant 0 : i32
    return %c0_i32, %c0_i32_0 : i32, i32
  }
}

</mosaic_0001>

<llo_original>
// kernel: tpu_custom_call.1
$region0: #{tpu_custom_call.1}
  #allocation0 [shape = 'u32[]', space=smem, size = 0x4, offset = 0x4, fixed_abs, tag = 'smem constant byte address 0x4 - core index']
  #allocation1 [shape = 'u32[72,128]{1,0:T(1,128)}', space=vmem, size = 0x9000, scoped, tag = 'internal scratch']
  #allocation2 [shape = 'f32[16,32]{1,0:T(8,128)}', space=vmem, size = 0x2000, scoped, tag = 'scratch operand']
  %s0 = inlined_call_operand.hbm [shape: f32[16,32], index: 0, kind: input, shape index: {}]
  %s1 = inlined_call_operand.vmem [shape: bf16[2,32,96], index: 1, kind: input, shape index: {}]
  %s2 = inlined_call_operand.hbm [shape: f32[2,1,96], index: 2, kind: input, shape index: {}]
  %s3 = inlined_call_operand.vmem [shape: bf16[2,32,32], index: 3, kind: input, shape index: {}]
  %s4 = inlined_call_operand.vmem [shape: f32[2,1,32], index: 4, kind: input, shape index: {}]
  %s5 = inlined_call_operand.vmem [shape: bf16[2,32,64], index: 5, kind: input, shape index: {}]
  %s6 = inlined_call_operand.vmem [shape: f32[2,1,64], index: 6, kind: input, shape index: {}]
  %s7 = inlined_call_operand.vmem [shape: bf16[2,64,32], index: 7, kind: input, shape index: {}]
  %s8 = inlined_call_operand.vmem [shape: f32[2,1,32], index: 8, kind: input, shape index: {}]
  %s9 = inlined_call_operand.hbm [shape: f32[2,1,32], index: 9, kind: input, shape index: {}]
  %s10 = inlined_call_operand.vmem [shape: f32[2,1,32], index: 10, kind: input, shape index: {}]
  %s11 = inlined_call_operand.hbm [shape: f32[2,1,32], index: 11, kind: input, shape index: {}]
  %s12 = inlined_call_operand.vmem [shape: f32[2,1,32], index: 12, kind: input, shape index: {}]
  %s13 = inlined_call_operand.hbm [shape: f32[16,32], index: 13, kind: output, shape index: {}]
  %s14 = sld [smem:[#allocation0]]
  $region109: #{tpu_custom_call.1} parent=0
    _
  %s16 = ssub.s32 1, %s14
  %s17 = scalar_select 0, %s16, %s14
  $region1: #{tpu_custom_call.1} parent=0
    #allocation3 [shape = 'u8[8192]{0}', space=vmem, size = 0x2000, scoped, tag = 'input window, operand 0, single buffered']
    #allocation4 [shape = 's32[2]{0}', space=sflag, size = 0x8, scoped, tag = 'scoped memory for tpu_custom_call.1']
    #allocation5 [shape = 's32[2]{0}', space=sflag, size = 0x8, scoped, tag = 'scoped memory for tpu_custom_call.1']
    #allocation6 [shape = 'u8[1024]{0}', space=vmem, size = 0x400, scoped, tag = 'input window, operand 2']
    #allocation7 [shape = 's32[2]{0}', space=sflag, size = 0x8, scoped, tag = 'scoped memory for tpu_custom_call.1']
    #allocation8 [shape = 'u8[1024]{0}', space=vmem, size = 0x400, scoped, tag = 'input window, operand 9']
    #allocation9 [shape = 'u8[1024]{0}', space=vmem, size = 0x400, scoped, tag = 'input window, operand 11']
    #allocation10 [shape = 's32[2]{0}', space=sflag, size = 0x8, scoped, tag = 'scoped memory for tpu_custom_call.1']
    #allocation11 [shape = 'u8[8192]{0}', space=vmem, size = 0x2000, scoped, tag = 'output window, operand 0, single buffered']
    %18 = vsyncpa [#allocation4], 0
    %19 = vsyncpa [#allocation7], 0
    %s20 = scalar_lea.sflag [#allocation7], 1
    %21 = vsyncpa %s20, 0
    %22 = vsyncpa [#allocation10], 0
    %s23 = scalar_lea.sflag [#allocation10], 1
    %24 = vsyncpa %s23, 0
    %25 = vsyncpa [#allocation5], 0
    loop: start=0, step=1, limit=4
    $region2: #{tpu_custom_call.1} parent=1 // loop_pre_header
      _
    $region3: #{tpu_custom_call.1} parent=1 // loop_header
      %s27 = sphi 0, %s31
      %p28 = scmp.ge.s32.totalorder %s27, 4
      %s35 = sphi 0, %s35
      %s37 = sphi 0, %s35
      %s38 = sphi 0, %s37
      %s52 = sphi 0, %s38
      %s58 = sphi 0, %s60
      %s61 = sphi 0, %s58
      %s62 = sphi 0, %s61
      %s78 = sphi 0, %s62
      %s84 = sphi 0, %s86
      %s87 = sphi 0, %s84
      %s88 = sphi 0, %s87
      %s104 = sphi 0, %s88
      %s110 = sphi 0, %s112
      %s113 = sphi 0, %s110
      %s114 = sphi 0, %s113
      %s130 = sphi 0, %s114
      %s136 = sphi 0, %s138
      %s139 = sphi 0, %s136
      %s140 = sphi 0, %s139
      %s156 = sphi 0, %s140
      %s162 = sphi 0, %s164
      %s165 = sphi 0, %s162
      %s166 = sphi 0, %s165
      %s182 = sphi 0, %s166
      %s188 = sphi 0, %s190
      %s191 = sphi 0, %s188
      %s192 = sphi 0, %s191
      %s208 = sphi 0, %s192
      %s214 = sphi 0, %s216
      %s217 = sphi 0, %s214
      %s218 = sphi 0, %s217
      %s234 = sphi 0, %s218
      %s240 = sphi 0, %s242
      %s243 = sphi 0, %s240
      %s244 = sphi 0, %s243
      %s260 = sphi 0, %s244
      %s266 = sphi 0, %s268
      %s269 = sphi 0, %s266
      %s270 = sphi 0, %s269
      %s286 = sphi 0, %s270
      %s292 = sphi 0, %s294
      %s295 = sphi 0, %s292
      %s296 = sphi 0, %s295
      %s312 = sphi 0, %s296
      %s318 = sphi 0, %s320
      %s321 = sphi 0, %s318
      %s322 = sphi 0, %s321
      %s338 = sphi 0, %s322
      %s344 = sphi 0, %s346
      %s347 = sphi 0, %s344
      %s348 = sphi 0, %s347
      %s364 = sphi 0, %s348
      %s368 = sphi 0, %s368
      %s370 = sphi 0, %s368
      %s371 = sphi 0, %s370
      %s385 = sphi 0, %s371
    $region4: #{tpu_custom_call.1} parent=1 // loop_header_branch
      %30 = sbr.rel (%p28) target = $region8
    $region5: #{tpu_custom_call.1} parent=1 // loop_body
      %s32 = ssub.s32 %s27, 1
      %s33 = ssub.s32 %s27, 2
      %s34 = sadd.s32 %s27, 1
      %s36 = sadd.s32 %s35, 1
      %p39 = scmp.eq.s32.totalorder %s27, 1
      %p40 = scmp.ne.s32.totalorder %s35, %s37
      %p41 = scmp.eq.s32.totalorder %s27, 0
      %p42 = por %p40, %p41
      %p43 = scmp.ne.s32.totalorder %s35, %s37
      %p44 = scmp.eq.s32.totalorder %s32, 1
      %p45 = por %p43, %p44
      %p46 = scmp.ne.s32.totalorder %s37, %s38
      %p47 = scmp.eq.s32.totalorder %s32, 0
      %p48 = por %p46, %p47
      %p49 = scmp.ne.s32.totalorder %s37, %s38
      %p50 = scmp.eq.s32.totalorder %s33, 1
      %p51 = por %p49, %p50
      %p53 = scmp.ne.s32.totalorder %s38, %s52
      %p54 = scmp.eq.s32.totalorder %s33, 0
      %p55 = por %p53, %p54
      %s56 = ssub.s32 %s27, %s34
      %p57 = scmp.eq.s32.totalorder %s56, 0
      %s59 = sadd.s32 %s58, 1
      %s60 = scalar_select %p57, %s58, %s59
      %p63 = pneg %p57
      %p64 = scmp.eq.s32.totalorder %s27, 1
      %p65 = por %p63, %p64
      %p66 = scmp.ne.s32.totalorder %s58, %s61
      %p67 = scmp.eq.s32.totalorder %s27, 0
      %p68 = por %p66, %p67
      %p69 = scmp.ne.s32.totalorder %s58, %s61
      %p70 = scmp.eq.s32.totalorder %s32, 1
      %p71 = por %p69, %p70
      %p72 = scmp.ne.s32.totalorder %s61, %s62
      %p73 = scmp.eq.s32.totalorder %s32, 0
      %p74 = por %p72, %p73
      %p75 = scmp.ne.s32.totalorder %s61, %s62
      %p76 = scmp.eq.s32.totalorder %s33, 1
      %p77 = por %p75, %p76
      %p79 = scmp.ne.s32.totalorder %s62, %s78
      %p80 = scmp.eq.s32.totalorder %s33, 0
      %p81 = por %p79, %p80
      %s82 = ssub.s32 %s27, %s34
      %p83 = scmp.eq.s32.totalorder %s82, 0
      %s85 = sadd.s32 %s84, 1
      %s86 = scalar_select %p83, %s84, %s85
      %p89 = pneg %p83
      %p90 = scmp.eq.s32.totalorder %s27, 1
      %p91 = por %p89, %p90
      %p92 = scmp.ne.s32.totalorder %s84, %s87
      %p93 = scmp.eq.s32.totalorder %s27, 0
      %p94 = por %p92, %p93
      %p95 = scmp.ne.s32.totalorder %s84, %s87
      %p96 = scmp.eq.s32.totalorder %s32, 1
      %p97 = por %p95, %p96
      %p98 = scmp.ne.s32.totalorder %s87, %s88
      %p99 = scmp.eq.s32.totalorder %s32, 0
      %p100 = por %p98, %p99
      %p101 = scmp.ne.s32.totalorder %s87, %s88
      %p102 = scmp.eq.s32.totalorder %s33, 1
      %p103 = por %p101, %p102
      %p105 = scmp.ne.s32.totalorder %s88, %s104
      %p106 = scmp.eq.s32.totalorder %s33, 0
      %p107 = por %p105, %p106
      %s108 = ssub.s32 %s27, %s34
      %p109 = scmp.eq.s32.totalorder %s108, 0
      %s111 = sadd.s32 %s110, 1
      %s112 = scalar_select %p109, %s110, %s111
      %p115 = pneg %p109
      %p116 = scmp.eq.s32.totalorder %s27, 1
      %p117 = por %p115, %p116
      %p118 = scmp.ne.s32.totalorder %s110, %s113
      %p119 = scmp.eq.s32.totalorder %s27, 0
      %p120 = por %p118, %p119
      %p121 = scmp.ne.s32.totalorder %s110, %s113
      %p122 = scmp.eq.s32.totalorder %s32, 1
      %p123 = por %p121, %p122
      %p124 = scmp.ne.s32.totalorder %s113, %s114
      %p125 = scmp.eq.s32.totalorder %s32, 0
      %p126 = por %p124, %p125
      %p127 = scmp.ne.s32.totalorder %s113, %s114
      %p128 = scmp.eq.s32.totalorder %s33, 1
      %p129 = por %p127, %p128
      %p131 = scmp.ne.s32.totalorder %s114, %s130
      %p132 = scmp.eq.s32.totalorder %s33, 0
      %p133 = por %p131, %p132
      %s134 = ssub.s32 %s27, %s34
      %p135 = scmp.eq.s32.totalorder %s134, 0
      %s137 = sadd.s32 %s136, 1
      %s138 = scalar_select %p135, %s136, %s137
      %p141 = pneg %p135
      %p142 = scmp.eq.s32.totalorder %s27, 1
      %p143 = por %p141, %p142
      %p144 = scmp.ne.s32.totalorder %s136, %s139
      %p145 = scmp.eq.s32.totalorder %s27, 0
      %p146 = por %p144, %p145
      %p147 = scmp.ne.s32.totalorder %s136, %s139
      %p148 = scmp.eq.s32.totalorder %s32, 1
      %p149 = por %p147, %p148
      %p150 = scmp.ne.s32.totalorder %s139, %s140
      %p151 = scmp.eq.s32.totalorder %s32, 0
      %p152 = por %p150, %p151
      %p153 = scmp.ne.s32.totalorder %s139, %s140
      %p154 = scmp.eq.s32.totalorder %s33, 1
      %p155 = por %p153, %p154
      %p157 = scmp.ne.s32.totalorder %s140, %s156
      %p158 = scmp.eq.s32.totalorder %s33, 0
      %p159 = por %p157, %p158
      %s160 = ssub.s32 %s27, %s34
      %p161 = scmp.eq.s32.totalorder %s160, 0
      %s163 = sadd.s32 %s162, 1
      %s164 = scalar_select %p161, %s162, %s163
      %p167 = pneg %p161
      %p168 = scmp.eq.s32.totalorder %s27, 1
      %p169 = por %p167, %p168
      %p170 = scmp.ne.s32.totalorder %s162, %s165
      %p171 = scmp.eq.s32.totalorder %s27, 0
      %p172 = por %p170, %p171
      %p173 = scmp.ne.s32.totalorder %s162, %s165
      %p174 = scmp.eq.s32.totalorder %s32, 1
      %p175 = por %p173, %p174
      %p176 = scmp.ne.s32.totalorder %s165, %s166
      %p177 = scmp.eq.s32.totalorder %s32, 0
      %p178 = por %p176, %p177
      %p179 = scmp.ne.s32.totalorder %s165, %s166
      %p180 = scmp.eq.s32.totalorder %s33, 1
      %p181 = por %p179, %p180
      %p183 = scmp.ne.s32.totalorder %s166, %s182
      %p184 = scmp.eq.s32.totalorder %s33, 0
      %p185 = por %p183, %p184
      %s186 = ssub.s32 %s27, %s34
      %p187 = scmp.eq.s32.totalorder %s186, 0
      %s189 = sadd.s32 %s188, 1
      %s190 = scalar_select %p187, %s188, %s189
      %p193 = pneg %p187
      %p194 = scmp.eq.s32.totalorder %s27, 1
      %p195 = por %p193, %p194
      %p196 = scmp.ne.s32.totalorder %s188, %s191
      %p197 = scmp.eq.s32.totalorder %s27, 0
      %p198 = por %p196, %p197
      %p199 = scmp.ne.s32.totalorder %s188, %s191
      %p200 = scmp.eq.s32.totalorder %s32, 1
      %p201 = por %p199, %p200
      %p202 = scmp.ne.s32.totalorder %s191, %s192
      %p203 = scmp.eq.s32.totalorder %s32, 0
      %p204 = por %p202, %p203
      %p205 = scmp.ne.s32.totalorder %s191, %s192
      %p206 = scmp.eq.s32.totalorder %s33, 1
      %p207 = por %p205, %p206
      %p209 = scmp.ne.s32.totalorder %s192, %s208
      %p210 = scmp.eq.s32.totalorder %s33, 0
      %p211 = por %p209, %p210
      %s212 = ssub.s32 %s27, %s34
      %p213 = scmp.eq.s32.totalorder %s212, 0
      %s215 = sadd.s32 %s214, 1
      %s216 = scalar_select %p213, %s214, %s215
      %p219 = pneg %p213
      %p220 = scmp.eq.s32.totalorder %s27, 1
      %p221 = por %p219, %p220
      %p222 = scmp.ne.s32.totalorder %s214, %s217
      %p223 = scmp.eq.s32.totalorder %s27, 0
      %p224 = por %p222, %p223
      %p225 = scmp.ne.s32.totalorder %s214, %s217
      %p226 = scmp.eq.s32.totalorder %s32, 1
      %p227 = por %p225, %p226
      %p228 = scmp.ne.s32.totalorder %s217, %s218
      %p229 = scmp.eq.s32.totalorder %s32, 0
      %p230 = por %p228, %p229
      %p231 = scmp.ne.s32.totalorder %s217, %s218
      %p232 = scmp.eq.s32.totalorder %s33, 1
      %p233 = por %p231, %p232
      %p235 = scmp.ne.s32.totalorder %s218, %s234
      %p236 = scmp.eq.s32.totalorder %s33, 0
      %p237 = por %p235, %p236
      %s238 = ssub.s32 %s27, %s34
      %p239 = scmp.eq.s32.totalorder %s238, 0
      %s241 = sadd.s32 %s240, 1
      %s242 = scalar_select %p239, %s240, %s241
      %p245 = pneg %p239
      %p246 = scmp.eq.s32.totalorder %s27, 1
      %p247 = por %p245, %p246
      %p248 = scmp.ne.s32.totalorder %s240, %s243
      %p249 = scmp.eq.s32.totalorder %s27, 0
      %p250 = por %p248, %p249
      %p251 = scmp.ne.s32.totalorder %s240, %s243
      %p252 = scmp.eq.s32.totalorder %s32, 1
      %p253 = por %p251, %p252
      %p254 = scmp.ne.s32.totalorder %s243, %s244
      %p255 = scmp.eq.s32.totalorder %s32, 0
      %p256 = por %p254, %p255
      %p257 = scmp.ne.s32.totalorder %s243, %s244
      %p258 = scmp.eq.s32.totalorder %s33, 1
      %p259 = por %p257, %p258
      %p261 = scmp.ne.s32.totalorder %s244, %s260
      %p262 = scmp.eq.s32.totalorder %s33, 0
      %p263 = por %p261, %p262
      %s264 = ssub.s32 %s27, %s34
      %p265 = scmp.eq.s32.totalorder %s264, 0
      %s267 = sadd.s32 %s266, 1
      %s268 = scalar_select %p265, %s266, %s267
      %p271 = pneg %p265
      %p272 = scmp.eq.s32.totalorder %s27, 1
      %p273 = por %p271, %p272
      %p274 = scmp.ne.s32.totalorder %s266, %s269
      %p275 = scmp.eq.s32.totalorder %s27, 0
      %p276 = por %p274, %p275
      %p277 = scmp.ne.s32.totalorder %s266, %s269
      %p278 = scmp.eq.s32.totalorder %s32, 1
      %p279 = por %p277, %p278
      %p280 = scmp.ne.s32.totalorder %s269, %s270
      %p281 = scmp.eq.s32.totalorder %s32, 0
      %p282 = por %p280, %p281
      %p283 = scmp.ne.s32.totalorder %s269, %s270
      %p284 = scmp.eq.s32.totalorder %s33, 1
      %p285 = por %p283, %p284
      %p287 = scmp.ne.s32.totalorder %s270, %s286
      %p288 = scmp.eq.s32.totalorder %s33, 0
      %p289 = por %p287, %p288
      %s290 = ssub.s32 %s27, %s34
      %p291 = scmp.eq.s32.totalorder %s290, 0
      %s293 = sadd.s32 %s292, 1
      %s294 = scalar_select %p291, %s292, %s293
      %p297 = pneg %p291
      %p298 = scmp.eq.s32.totalorder %s27, 1
      %p299 = por %p297, %p298
      %p300 = scmp.ne.s32.totalorder %s292, %s295
      %p301 = scmp.eq.s32.totalorder %s27, 0
      %p302 = por %p300, %p301
      %p303 = scmp.ne.s32.totalorder %s292, %s295
      %p304 = scmp.eq.s32.totalorder %s32, 1
      %p305 = por %p303, %p304
      %p306 = scmp.ne.s32.totalorder %s295, %s296
      %p307 = scmp.eq.s32.totalorder %s32, 0
      %p308 = por %p306, %p307
      %p309 = scmp.ne.s32.totalorder %s295, %s296
      %p310 = scmp.eq.s32.totalorder %s33, 1
      %p311 = por %p309, %p310
      %p313 = scmp.ne.s32.totalorder %s296, %s312
      %p314 = scmp.eq.s32.totalorder %s33, 0
      %p315 = por %p313, %p314
      %s316 = ssub.s32 %s27, %s34
      %p317 = scmp.eq.s32.totalorder %s316, 0
      %s319 = sadd.s32 %s318, 1
      %s320 = scalar_select %p317, %s318, %s319
      %p323 = pneg %p317
      %p324 = scmp.eq.s32.totalorder %s27, 1
      %p325 = por %p323, %p324
      %p326 = scmp.ne.s32.totalorder %s318, %s321
      %p327 = scmp.eq.s32.totalorder %s27, 0
      %p328 = por %p326, %p327
      %p329 = scmp.ne.s32.totalorder %s318, %s321
      %p330 = scmp.eq.s32.totalorder %s32, 1
      %p331 = por %p329, %p330
      %p332 = scmp.ne.s32.totalorder %s321, %s322
      %p333 = scmp.eq.s32.totalorder %s32, 0
      %p334 = por %p332, %p333
      %p335 = scmp.ne.s32.totalorder %s321, %s322
      %p336 = scmp.eq.s32.totalorder %s33, 1
      %p337 = por %p335, %p336
      %p339 = scmp.ne.s32.totalorder %s322, %s338
      %p340 = scmp.eq.s32.totalorder %s33, 0
      %p341 = por %p339, %p340
      %s342 = ssub.s32 %s27, %s34
      %p343 = scmp.eq.s32.totalorder %s342, 0
      %s345 = sadd.s32 %s344, 1
      %s346 = scalar_select %p343, %s344, %s345
      %p349 = pneg %p343
      %p350 = scmp.eq.s32.totalorder %s27, 1
      %p351 = por %p349, %p350
      %p352 = scmp.ne.s32.totalorder %s344, %s347
      %p353 = scmp.eq.s32.totalorder %s27, 0
      %p354 = por %p352, %p353
      %p355 = scmp.ne.s32.totalorder %s344, %s347
      %p356 = scmp.eq.s32.totalorder %s32, 1
      %p357 = por %p355, %p356
      %p358 = scmp.ne.s32.totalorder %s347, %s348
      %p359 = scmp.eq.s32.totalorder %s32, 0
      %p360 = por %p358, %p359
      %p361 = scmp.ne.s32.totalorder %s347, %s348
      %p362 = scmp.eq.s32.totalorder %s33, 1
      %p363 = por %p361, %p362
      %p365 = scmp.ne.s32.totalorder %s348, %s364
      %p366 = scmp.eq.s32.totalorder %s33, 0
      %p367 = por %p365, %p366
      %s369 = sadd.s32 %s368, 1
      %p372 = scmp.eq.s32.totalorder %s27, 1
      %p373 = scmp.ne.s32.totalorder %s368, %s370
      %p374 = scmp.eq.s32.totalorder %s27, 0
      %p375 = por %p373, %p374
      %p376 = scmp.ne.s32.totalorder %s368, %s370
      %p377 = scmp.eq.s32.totalorder %s32, 1
      %p378 = por %p376, %p377
      %p379 = scmp.ne.s32.totalorder %s370, %s371
      %p380 = scmp.eq.s32.totalorder %s32, 0
      %p381 = por %p379, %p380
      %p382 = scmp.ne.s32.totalorder %s370, %s371
      %p383 = scmp.eq.s32.totalorder %s33, 1
      %p384 = por %p382, %p383
      %p386 = scmp.ne.s32.totalorder %s371, %s385
      %p387 = scmp.eq.s32.totalorder %s33, 0
      %p388 = por %p386, %p387
      %p389 = scmp.le.s32.totalorder 1, %s27
      %p390 = scmp.lt.s32.totalorder %s27, 3
      %p391 = pnand %p389, %p390
      %p392 = pneg %p391
      // Predicated region
      $region9: #{tpu_custom_call.1} parent=5 // pred_check
        _
      $region10: #{tpu_custom_call.1} parent=5 // pred_check_branch
        %394 = sbr.rel (%p391) target = $region12
      $region11: #{tpu_custom_call.1} parent=5 // pred_region
        %s395 = ssub.s32 %s27, 1
        // Predicated region
        $region13: #{tpu_custom_call.1} parent=11 // pred_check
          %p396 = pneg %p48
        $region14: #{tpu_custom_call.1} parent=11 // pred_check_branch
          %398 = sbr.rel (%p396) target = $region16
        $region15: #{tpu_custom_call.1} parent=11 // pred_region
          %400 = vsyncadd [#allocation4], 0
          %s401 = sshll.u32 %s0, 4
          %s402 = int_to_ptr.hbm [resolvable:$true] %s401
          %s403 = sshll.u32 [#allocation3], 4
          %s404 = int_to_ptr.vmem [resolvable:$true] %s403
          %409 = dma.hbm_to_vmem [thread:$0]  %s402, 256, %s404, [#allocation4], 128, 128, 8
        $region16: #{tpu_custom_call.1} parent=11 // pred_fallthru
          _
      $region12: #{tpu_custom_call.1} parent=5 // pred_fallthru
        _
      %p410 = scmp.lt.s32.totalorder %s27, 2
      // Predicated region
      $region17: #{tpu_custom_call.1} parent=5 // pred_check
        %p411 = pneg %p410
      $region18: #{tpu_custom_call.1} parent=5 // pred_check_branch
        %413 = sbr.rel (%p411) target = $region20
      $region19: #{tpu_custom_call.1} parent=5 // pred_region
        // Predicated region
        $region21: #{tpu_custom_call.1} parent=19 // pred_check
          %p414 = pneg %p68
        $region22: #{tpu_custom_call.1} parent=19 // pred_check_branch
          %416 = sbr.rel (%p414) target = $region24
        $region23: #{tpu_custom_call.1} parent=19 // pred_region
          %p417 = scmp.lt.s32.totalorder %s27, 1
          %s418 = scalar_select %p417, %s27, 1
          %s419 = smul.addr %s418, 4
          %s420 = smul.addr %s419, 4
          %s421 = scalar_lea.vmem %s1, %s420
        $region24: #{tpu_custom_call.1} parent=19 // pred_fallthru
          _
        // Predicated region
        $region25: #{tpu_custom_call.1} parent=19 // pred_check
          %p422 = pneg %p94
        $region26: #{tpu_custom_call.1} parent=19 // pred_check_branch
          %424 = sbr.rel (%p422) target = $region28
        $region27: #{tpu_custom_call.1} parent=19 // pred_region
          %s425 = sand.u32 %s27, 1
          %s426 = scalar_lea.sflag [#allocation7], %s425
          %s427 = sand.u32 %s84, 1
          %s428 = scalar_lea.vmem [#allocation6], %s427
          %430 = vsyncadd %s426, 0
          %s431 = scalar_lea.hbm %s2, %s27
          %s433 = sshll.u32 %s431, 4
          %s434 = int_to_ptr.hbm [resolvable:$true] %s433
          %s435 = sshll.u32 %s428, 4
          %s436 = int_to_ptr.vmem [resolvable:$true] %s435
          %438 = dma.hbm_to_vmem [thread:$0]  %s434, 16, %s436, %s426
        $region28: #{tpu_custom_call.1} parent=19 // pred_fallthru
          _
        // Predicated region
        $region29: #{tpu_custom_call.1} parent=19 // pred_check
          %p439 = pneg %p120
        $region30: #{tpu_custom_call.1} parent=19 // pred_check_branch
          %441 = sbr.rel (%p439) target = $region32
        $region31: #{tpu_custom_call.1} parent=19 // pred_region
          %p442 = scmp.lt.s32.totalorder %s27, 1
          %s443 = scalar_select %p442, %s27, 1
          %s444 = smul.addr %s443, 4
          %s445 = smul.addr %s444, 4
          %s446 = scalar_lea.vmem %s3, %s445
        $region32: #{tpu_custom_call.1} parent=19 // pred_fallthru
          _
        // Predicated region
        $region33: #{tpu_custom_call.1} parent=19 // pred_check
          %p447 = pneg %p146
        $region34: #{tpu_custom_call.1} parent=19 // pred_check_branch
          %449 = sbr.rel (%p447) target = $region36
        $region35: #{tpu_custom_call.1} parent=19 // pred_region
          %p450 = scmp.lt.s32.totalorder %s27, 1
          %s451 = scalar_select %p450, %s27, 1
          %s452 = scalar_lea.vmem %s4, %s451
        $region36: #{tpu_custom_call.1} parent=19 // pred_fallthru
          _
        // Predicated region
        $region37: #{tpu_custom_call.1} parent=19 // pred_check
          %p453 = pneg %p172
        $region38: #{tpu_custom_call.1} parent=19 // pred_check_branch
          %455 = sbr.rel (%p453) target = $region40
        $region39: #{tpu_custom_call.1} parent=19 // pred_region
          %p456 = scmp.lt.s32.totalorder %s27, 1
          %s457 = scalar_select %p456, %s27, 1
          %s458 = smul.addr %s457, 4
          %s459 = smul.addr %s458, 4
          %s460 = scalar_lea.vmem %s5, %s459
        $region40: #{tpu_custom_call.1} parent=19 // pred_fallthru
          _
        // Predicated region
        $region41: #{tpu_custom_call.1} parent=19 // pred_check
          %p461 = pneg %p198
        $region42: #{tpu_custom_call.1} parent=19 // pred_check_branch
          %463 = sbr.rel (%p461) target = $region44
        $region43: #{tpu_custom_call.1} parent=19 // pred_region
          %p464 = scmp.lt.s32.totalorder %s27, 1
          %s465 = scalar_select %p464, %s27, 1
          %s466 = scalar_lea.vmem %s6, %s465
        $region44: #{tpu_custom_call.1} parent=19 // pred_fallthru
          _
        // Predicated region
        $region45: #{tpu_custom_call.1} parent=19 // pred_check
          %p467 = pneg %p224
        $region46: #{tpu_custom_call.1} parent=19 // pred_check_branch
          %469 = sbr.rel (%p467) target = $region48
        $region47: #{tpu_custom_call.1} parent=19 // pred_region
          %p470 = scmp.lt.s32.totalorder %s27, 1
          %s471 = scalar_select %p470, %s27, 1
          %s472 = smul.addr %s471, 8
          %s473 = smul.addr %s472, 4
          %s474 = scalar_lea.vmem %s7, %s473
        $region48: #{tpu_custom_call.1} parent=19 // pred_fallthru
          _
        // Predicated region
        $region49: #{tpu_custom_call.1} parent=19 // pred_check
          %p475 = pneg %p250
        $region50: #{tpu_custom_call.1} parent=19 // pred_check_branch
          %477 = sbr.rel (%p475) target = $region52
        $region51: #{tpu_custom_call.1} parent=19 // pred_region
          %p478 = scmp.lt.s32.totalorder %s27, 1
          %s479 = scalar_select %p478, %s27, 1
          %s480 = scalar_lea.vmem %s8, %s479
        $region52: #{tpu_custom_call.1} parent=19 // pred_fallthru
          _
        // Predicated region
        $region53: #{tpu_custom_call.1} parent=19 // pred_check
          %p481 = pneg %p276
        $region54: #{tpu_custom_call.1} parent=19 // pred_check_branch
          %483 = sbr.rel (%p481) target = $region56
        $region55: #{tpu_custom_call.1} parent=19 // pred_region
          %s484 = sand.u32 %s27, 1
          %s485 = scalar_lea.sflag [#allocation7], %s484
          %s486 = sand.u32 %s266, 1
          %s487 = scalar_lea.vmem [#allocation8], %s486
          %489 = vsyncadd %s485, 0
          %s490 = scalar_lea.hbm %s9, %s27
          %s492 = sshll.u32 %s490, 4
          %s493 = int_to_ptr.hbm [resolvable:$true] %s492
          %s494 = sshll.u32 %s487, 4
          %s495 = int_to_ptr.vmem [resolvable:$true] %s494
          %497 = dma.hbm_to_vmem [thread:$0]  %s493, 16, %s495, %s485
        $region56: #{tpu_custom_call.1} parent=19 // pred_fallthru
          _
        // Predicated region
        $region57: #{tpu_custom_call.1} parent=19 // pred_check
          %p498 = pneg %p302
        $region58: #{tpu_custom_call.1} parent=19 // pred_check_branch
          %500 = sbr.rel (%p498) target = $region60
        $region59: #{tpu_custom_call.1} parent=19 // pred_region
          %p501 = scmp.lt.s32.totalorder %s27, 1
          %s502 = scalar_select %p501, %s27, 1
          %s503 = scalar_lea.vmem %s10, %s502
        $region60: #{tpu_custom_call.1} parent=19 // pred_fallthru
          _
        // Predicated region
        $region61: #{tpu_custom_call.1} parent=19 // pred_check
          %p504 = pneg %p328
        $region62: #{tpu_custom_call.1} parent=19 // pred_check_branch
          %506 = sbr.rel (%p504) target = $region64
        $region63: #{tpu_custom_call.1} parent=19 // pred_region
          %s507 = sand.u32 %s318, 1
          %s508 = scalar_lea.sflag [#allocation10], %s507
          %s509 = sand.u32 %s318, 1
          %s510 = scalar_lea.vmem [#allocation9], %s509
          %512 = vsyncadd %s508, 0
          %s513 = scalar_lea.hbm %s11, %s27
          %s515 = sshll.u32 %s513, 4
          %s516 = int_to_ptr.hbm [resolvable:$true] %s515
          %s517 = sshll.u32 %s510, 4
          %s518 = int_to_ptr.vmem [resolvable:$true] %s517
          %520 = dma.hbm_to_vmem [thread:$0]  %s516, 16, %s518, %s508
        $region64: #{tpu_custom_call.1} parent=19 // pred_fallthru
          _
        // Predicated region
        $region65: #{tpu_custom_call.1} parent=19 // pred_check
          %p521 = pneg %p354
        $region66: #{tpu_custom_call.1} parent=19 // pred_check_branch
          %523 = sbr.rel (%p521) target = $region68
        $region67: #{tpu_custom_call.1} parent=19 // pred_region
          %p524 = scmp.lt.s32.totalorder %s27, 1
          %s525 = scalar_select %p524, %s27, 1
          %s526 = scalar_lea.vmem %s12, %s525
        $region68: #{tpu_custom_call.1} parent=19 // pred_fallthru
          _
      $region20: #{tpu_custom_call.1} parent=5 // pred_fallthru
        _
      %p527 = scmp.le.s32.totalorder 1, %s27
      %p528 = scmp.lt.s32.totalorder %s27, 3
      %p529 = pnand %p527, %p528
      %p530 = pneg %p529
      // Predicated region
      $region69: #{tpu_custom_call.1} parent=5 // pred_check
        _
      $region70: #{tpu_custom_call.1} parent=5 // pred_check_branch
        %532 = sbr.rel (%p529) target = $region72
      $region71: #{tpu_custom_call.1} parent=5 // pred_region
        %s533 = ssub.s32 %s27, 1
        // Predicated region
        $region73: #{tpu_custom_call.1} parent=71 // pred_check
          %p534 = pneg %p48
        $region74: #{tpu_custom_call.1} parent=71 // pred_check_branch
          %536 = sbr.rel (%p534) target = $region76
        $region75: #{tpu_custom_call.1} parent=71 // pred_region
          %538 = dma.done [#allocation4], 256
        $region76: #{tpu_custom_call.1} parent=71 // pred_fallthru
          _
        %s539 = sand.u32 %s32, 1
        %s540 = scalar_lea.sflag [#allocation7], %s539
        %s541 = sand.u32 %s87, 1
        %s542 = scalar_lea.vmem [#allocation6], %s541
        // Predicated region
        $region77: #{tpu_custom_call.1} parent=71 // pred_check
          %p543 = pneg %p100
        $region78: #{tpu_custom_call.1} parent=71 // pred_check_branch
          %545 = sbr.rel (%p543) target = $region80
        $region79: #{tpu_custom_call.1} parent=71 // pred_region
          %547 = dma.done %s540, 16
        $region80: #{tpu_custom_call.1} parent=71 // pred_fallthru
          _
        %s548 = sand.u32 %s32, 1
        %s549 = scalar_lea.sflag [#allocation7], %s548
        %s550 = sand.u32 %s269, 1
        %s551 = scalar_lea.vmem [#allocation8], %s550
        // Predicated region
        $region81: #{tpu_custom_call.1} parent=71 // pred_check
          %p552 = pneg %p282
        $region82: #{tpu_custom_call.1} parent=71 // pred_check_branch
          %554 = sbr.rel (%p552) target = $region84
        $region83: #{tpu_custom_call.1} parent=71 // pred_region
          %556 = dma.done %s549, 16
        $region84: #{tpu_custom_call.1} parent=71 // pred_fallthru
          _
        %s557 = sand.u32 %s321, 1
        %s558 = scalar_lea.sflag [#allocation10], %s557
        %s559 = sand.u32 %s321, 1
        %s560 = scalar_lea.vmem [#allocation9], %s559
        // Predicated region
        $region85: #{tpu_custom_call.1} parent=71 // pred_check
          %p561 = pneg %p334
        $region86: #{tpu_custom_call.1} parent=71 // pred_check_branch
          %563 = sbr.rel (%p561) target = $region88
        $region87: #{tpu_custom_call.1} parent=71 // pred_region
          %565 = dma.done %s558, 16
        $region88: #{tpu_custom_call.1} parent=71 // pred_fallthru
          _
        %p566 = pneg %p48
        %p567 = pneg %p45
        %p568 = scmp.lt.s32.totalorder %s32, 1
        %s569 = scalar_select %p568, %s32, 1
        %s570 = smul.addr %s569, 4
        %s571 = smul.addr %s570, 4
        %s572 = scalar_lea.vmem %s1, %s571
        %p573 = pneg %p74
        %p574 = pneg %p71
        %s575 = sand.u32 %s32, 1
        %s576 = scalar_lea.sflag [#allocation7], %s575
        %s577 = sand.u32 %s87, 1
        %s578 = scalar_lea.vmem [#allocation6], %s577
        %p579 = pneg %p100
        %p580 = pneg %p97
        %p581 = scmp.lt.s32.totalorder %s32, 1
        %s582 = scalar_select %p581, %s32, 1
        %s583 = smul.addr %s582, 4
        %s584 = smul.addr %s583, 4
        %s585 = scalar_lea.vmem %s3, %s584
        %p586 = pneg %p126
        %p587 = pneg %p123
        %p588 = scmp.lt.s32.totalorder %s32, 1
        %s589 = scalar_select %p588, %s32, 1
        %s590 = scalar_lea.vmem %s4, %s589
        %p591 = pneg %p152
        %p592 = pneg %p149
        %p593 = scmp.lt.s32.totalorder %s32, 1
        %s594 = scalar_select %p593, %s32, 1
        %s595 = smul.addr %s594, 4
        %s596 = smul.addr %s595, 4
        %s597 = scalar_lea.vmem %s5, %s596
        %p598 = pneg %p178
        %p599 = pneg %p175
        %p600 = scmp.lt.s32.totalorder %s32, 1
        %s601 = scalar_select %p600, %s32, 1
        %s602 = scalar_lea.vmem %s6, %s601
        %p603 = pneg %p204
        %p604 = pneg %p201
        %p605 = scmp.lt.s32.totalorder %s32, 1
        %s606 = scalar_select %p605, %s32, 1
        %s607 = smul.addr %s606, 8
        %s608 = smul.addr %s607, 4
        %s609 = scalar_lea.vmem %s7, %s608
        %p610 = pneg %p230
        %p611 = pneg %p227
        %p612 = scmp.lt.s32.totalorder %s32, 1
        %s613 = scalar_select %p612, %s32, 1
        %s614 = scalar_lea.vmem %s8, %s613
        %p615 = pneg %p256
        %p616 = pneg %p253
        %s617 = sand.u32 %s32, 1
        %s618 = scalar_lea.sflag [#allocation7], %s617
        %s619 = sand.u32 %s269, 1
        %s620 = scalar_lea.vmem [#allocation8], %s619
        %p621 = pneg %p282
        %p622 = pneg %p279
        %p623 = scmp.lt.s32.totalorder %s32, 1
        %s624 = scalar_select %p623, %s32, 1
        %s625 = scalar_lea.vmem %s10, %s624
        %p626 = pneg %p308
        %p627 = pneg %p305
        %s628 = sand.u32 %s321, 1
        %s629 = scalar_lea.sflag [#allocation10], %s628
        %s630 = sand.u32 %s321, 1
        %s631 = scalar_lea.vmem [#allocation9], %s630
        %p632 = pneg %p334
        %p633 = pneg %p331
        %p634 = scmp.lt.s32.totalorder %s32, 1
        %s635 = scalar_select %p634, %s32, 1
        %s636 = scalar_lea.vmem %s12, %s635
        %p637 = pneg %p360
        %p638 = pneg %p357
        %p639 = pneg %p381
        %p640 = pneg %p378
        %p641 = scmp.lt.s32.totalorder %s32, 1
        %s642 = scalar_select %p641, %s32, 1
        %s643 = smul.addr %s642, 4
        %s644 = smul.addr %s643, 4
        %s645 = scalar_lea.vmem %s1, %s644
        %p646 = scmp.lt.s32.totalorder %s32, 1
        %s647 = scalar_select %p646, %s32, 1
        %s648 = smul.addr %s647, 4
        %s649 = smul.addr %s648, 4
        %s650 = scalar_lea.vmem %s3, %s649
        %p651 = scmp.lt.s32.totalorder %s32, 1
        %s652 = scalar_select %p651, %s32, 1
        %s653 = scalar_lea.vmem %s4, %s652
        %p654 = scmp.lt.s32.totalorder %s32, 1
        %s655 = scalar_select %p654, %s32, 1
        %s656 = smul.addr %s655, 4
        %s657 = smul.addr %s656, 4
        %s658 = scalar_lea.vmem %s5, %s657
        %p659 = scmp.lt.s32.totalorder %s32, 1
        %s660 = scalar_select %p659, %s32, 1
        %s661 = scalar_lea.vmem %s6, %s660
        %p662 = scmp.lt.s32.totalorder %s32, 1
        %s663 = scalar_select %p662, %s32, 1
        %s664 = smul.addr %s663, 8
        %s665 = smul.addr %s664, 4
        %s666 = scalar_lea.vmem %s7, %s665
        %p667 = scmp.lt.s32.totalorder %s32, 1
        %s668 = scalar_select %p667, %s32, 1
        %s669 = scalar_lea.vmem %s8, %s668
        %p670 = scmp.lt.s32.totalorder %s32, 1
        %s671 = scalar_select %p670, %s32, 1
        %s672 = scalar_lea.vmem %s10, %s671
        %p673 = scmp.lt.s32.totalorder %s32, 1
        %s674 = scalar_select %p673, %s32, 1
        %s675 = scalar_lea.vmem %s12, %s674
        %p677 = scmp.eq.s32.totalorder %s32, 0
        // Predicated region
        $region89: #{tpu_custom_call.1} parent=71 // pred_check
          %p678 = pneg %p677
        $region90: #{tpu_custom_call.1} parent=71 // pred_check_branch
          %680 = sbr.rel (%p678) target = $region92
        $region91: #{tpu_custom_call.1} parent=71 // pred_region
          %v681 = vld [vmem:[#allocation3] sm:$0xff]
          %v682 = vld [vmem:[#allocation3 + $0x8] sm:$0xff]
          %vm683 = vcmask 261120
          %684 = vst.msk [vmem:[#allocation2] sm:$0xff] %vm683, %v681
          %685 = vst.msk [vmem:[#allocation2 + $0x8] sm:$0xff] %vm683, %v682
        $region92: #{tpu_custom_call.1} parent=71 // pred_fallthru
          _
        %v686 = vld [vmem:[#allocation2] sm:$0xff]
        %v687 = vld [vmem:[#allocation2 + $0x8] sm:$0xff]
        %v688 = vpack.c.bf16 %v687, %v686
        %v689 = vld [vmem:[%s645] sm:$0xf]
        %v690 = vld [vmem:[%s645 + $0x4] sm:$0xf]
        %v691 = vld [vmem:[%s645 + $0x8] sm:$0xf]
        %v692 = vld [vmem:[%s645 + $0xc] sm:$0xf]
        %v693 = vld [vmem:[%s542] sm:$0x1]
        %v695 = vperm.slane %v693, 0
        %v701 = vunpack.c.l.b16 %v689
        %v702 = vunpack.c.l.b16 %v690
        %v703 = vunpack.c.l.b16 %v691
        %v704 = vunpack.c.l.b16 %v692
        %v705 = vpack.c.b16 %v702, %v701
        %v706 = vpack.c.b16 %v704, %v703
        %vm709 = vcmask 261120
        %v711 = vsel %vm709, %v688, 0
        %713 = vmatpush.bf16.msra.mxu0 0
        %714 = vmatpush.bf16.msra.mxu0 0
        %715 = vmatpush.bf16.msra.mxu0 0
        %716 = vmatpush.bf16.msra.mxu0 0
        %717 = vmatpush.bf16.msra.mxu0 0
        %718 = vmatpush.bf16.msra.mxu0 0
        %719 = vmatpush.bf16.msra.mxu0 %v706
        %720 = vmatpush.bf16.msra.mxu0 %v705
        %721 = vmatmul.bf16.gmra.mxu0 %v711
        %v722 = vpop.f32.mrf.mxu0
        %v723 = vadd.f32 %v695, %v722
        %v724 = vpop.f32.mrf.mxu0
        %v725 = vadd.f32 %v695, %v724
        %726 = vdwg.mxu0
        %v727 = vpack.c.bf16 %v723, %v723
        %v728 = vpack.c.bf16 %v725, %v725
        %v730 = vunpack.c.l.b16 %v727
        %v731 = vpack.c.b16 %v730, %v730
        %732 = vrot.lane.b32.xlu0 %v731, 96
        %v733 = vpop.permute.xlu0 %732
        %vm734 = vcmask 64512
        %v736 = vsel %vm734, %v727, 0
        %v739 = vsel %vm734, %v733, 0
        %741 = vmatpush.bf16.xpose.msra.mxu0 0
        %742 = vmatpush.bf16.xpose.msra.mxu0 0
        %743 = vmatpush.bf16.xpose.msra.mxu0 0
        %744 = vmatpush.bf16.xpose.msra.mxu0 0
        %745 = vmatpush.bf16.xpose.msra.mxu0 0
        %746 = vmatpush.bf16.xpose.msra.mxu0 0
        %747 = vmatpush.bf16.xpose.msra.mxu0 0
        %748 = vmatpush.bf16.xpose.msra.mxu0 %v739
        %749 = vmatmul.bf16.gmra.mxu0 %v736
        %v750 = vpop.f32.mrf.mxu0
        %v751 = vadd.f32 0.0, %v750
        %v752 = vpop.f32.mrf.mxu0
        %753 = vdwg.mxu0
        %v755 = vunpack.c.l.b16 %v728
        %v756 = vpack.c.b16 %v755, %v755
        %757 = vrot.lane.b32.xlu0 %v756, 96
        %v758 = vpop.permute.xlu0 %757
        %v760 = vsel %vm734, %v728, 0
        %v763 = vsel %vm734, %v758, 0
        %765 = vmatpush.bf16.xpose.msra.mxu0 0
        %766 = vmatpush.bf16.xpose.msra.mxu0 0
        %767 = vmatpush.bf16.xpose.msra.mxu0 0
        %768 = vmatpush.bf16.xpose.msra.mxu0 0
        %769 = vmatpush.bf16.xpose.msra.mxu0 0
        %770 = vmatpush.bf16.xpose.msra.mxu0 0
        %771 = vmatpush.bf16.xpose.msra.mxu0 0
        %772 = vmatpush.bf16.xpose.msra.mxu0 %v763
        %773 = vmatmul.bf16.gmra.mxu0 %v760
        %v774 = vpop.f32.mrf.mxu0
        %v775 = vadd.f32 0.0, %v774
        %v776 = vpop.f32.mrf.mxu0
        %777 = vdwg.mxu0
        %v778 = vsel %vm734, %v751, -inf
        %779 = vmax.xlane.f32.xlu0 %v778
        %v780 = vpop.xlane.xlu0 %779
        %v781 = vsel %vm734, %v775, -inf
        %782 = vmax.xlane.f32.xlu0 %v781
        %v783 = vpop.xlane.xlu0 %782
        %v784 = vsub.f32 %v751, %v780
        %v785 = vsub.f32 %v775, %v783
        %v786 = vmul.f32 %v784, 1.442695
        %v787 = vpow.pop %v786
        %v788 = vmul.f32 %v785, 1.442695
        %v789 = vpow.pop %v788
        %v790 = vsel %vm734, %v787, 0.0
        %791 = vadd.xlane.f32.xlu0 %v790
        %v792 = vpop.xlane.xlu0 %791
        %v793 = vsel %vm734, %v789, 0.0
        %794 = vadd.xlane.f32.xlu0 %v793
        %v795 = vpop.xlane.xlu0 %794
        %v796 = vrcp.pop %v792
        %v797 = vrcp.pop %v795
        %v798 = vmul.f32 %v787, %v796
        %v799 = vmul.f32 %v789, %v797
        %v800 = vpack.c.bf16 %v798, %v798
        %v801 = vpack.c.bf16 %v799, %v799
        %802 = vrot.lane.b32.xlu0 %v731, 64
        %v803 = vpop.permute.xlu0 %802
        %v805 = vsel %vm734, %v800, 0
        %vm807 = vcmask 1043456
        %v809 = vsel %vm807, %v803, 0
        %811 = vmatpush.bf16.msra.mxu0 0
        %812 = vmatpush.bf16.msra.mxu0 0
        %813 = vmatpush.bf16.msra.mxu0 0
        %814 = vmatpush.bf16.msra.mxu0 0
        %815 = vmatpush.bf16.msra.mxu0 0
        %816 = vmatpush.bf16.msra.mxu0 0
        %817 = vmatpush.bf16.msra.mxu0 0
        %818 = vmatpush.bf16.msra.mxu0 %v809
        %819 = vmatmul.bf16.gmra.mxu0 %v805
        %v820 = vpop.f32.mrf.mxu0
        %v821 = vadd.f32 0.0, %v820
        %v822 = vpop.f32.mrf.mxu0
        %823 = vdwg.mxu0
        %824 = vrot.lane.b32.xlu0 %v756, 64
        %v825 = vpop.permute.xlu0 %824
        %v827 = vsel %vm734, %v801, 0
        %v830 = vsel %vm807, %v825, 0
        %832 = vmatpush.bf16.msra.mxu0 0
        %833 = vmatpush.bf16.msra.mxu0 0
        %834 = vmatpush.bf16.msra.mxu0 0
        %835 = vmatpush.bf16.msra.mxu0 0
        %836 = vmatpush.bf16.msra.mxu0 0
        %837 = vmatpush.bf16.msra.mxu0 0
        %838 = vmatpush.bf16.msra.mxu0 0
        %839 = vmatpush.bf16.msra.mxu0 %v830
        %840 = vmatmul.bf16.gmra.mxu0 %v827
        %v841 = vpop.f32.mrf.mxu0
        %v842 = vadd.f32 0.0, %v841
        %v843 = vpop.f32.mrf.mxu0
        %844 = vdwg.mxu0
        %845 = vrot.lane.b32.xlu0 %v731, 120
        %v846 = vpop.permute.xlu0 %845
        %847 = vrot.lane.b32.xlu0 %v731, 88
        %v848 = vpop.permute.xlu0 %847
        %v850 = vsel %vm734, %v846, 0
        %v853 = vsel %vm734, %v848, 0
        %855 = vmatpush.bf16.xpose.msra.mxu0 0
        %856 = vmatpush.bf16.xpose.msra.mxu0 0
        %857 = vmatpush.bf16.xpose.msra.mxu0 0
        %858 = vmatpush.bf16.xpose.msra.mxu0 0
        %859 = vmatpush.bf16.xpose.msra.mxu0 0
        %860 = vmatpush.bf16.xpose.msra.mxu0 0
        %861 = vmatpush.bf16.xpose.msra.mxu0 0
        %862 = vmatpush.bf16.xpose.msra.mxu0 %v853
        %863 = vmatmul.bf16.gmra.mxu0 %v850
        %v864 = vpop.f32.mrf.mxu0
        %v865 = vadd.f32 0.0, %v864
        %v866 = vpop.f32.mrf.mxu0
        %867 = vdwg.mxu0
        %868 = vrot.lane.b32.xlu0 %v756, 120
        %v869 = vpop.permute.xlu0 %868
        %870 = vrot.lane.b32.xlu0 %v756, 88
        %v871 = vpop.permute.xlu0 %870
        %v873 = vsel %vm734, %v869, 0
        %v876 = vsel %vm734, %v871, 0
        %878 = vmatpush.bf16.xpose.msra.mxu0 0
        %879 = vmatpush.bf16.xpose.msra.mxu0 0
        %880 = vmatpush.bf16.xpose.msra.mxu0 0
        %881 = vmatpush.bf16.xpose.msra.mxu0 0
        %882 = vmatpush.bf16.xpose.msra.mxu0 0
        %883 = vmatpush.bf16.xpose.msra.mxu0 0
        %884 = vmatpush.bf16.xpose.msra.mxu0 0
        %885 = vmatpush.bf16.xpose.msra.mxu0 %v876
        %886 = vmatmul.bf16.gmra.mxu0 %v873
        %v887 = vpop.f32.mrf.mxu0
        %v888 = vadd.f32 0.0, %v887
        %v889 = vpop.f32.mrf.mxu0
        %890 = vdwg.mxu0
        %v891 = vsel %vm734, %v865, -inf
        %892 = vmax.xlane.f32.xlu0 %v891
        %v893 = vpop.xlane.xlu0 %892
        %v894 = vsel %vm734, %v888, -inf
        %895 = vmax.xlane.f32.xlu0 %v894
        %v896 = vpop.xlane.xlu0 %895
        %v897 = vsub.f32 %v865, %v893
        %v898 = vsub.f32 %v888, %v896
        %v899 = vmul.f32 %v897, 1.442695
        %v900 = vpow.pop %v899
        %v901 = vmul.f32 %v898, 1.442695
        %v902 = vpow.pop %v901
        %v903 = vsel %vm734, %v900, 0.0
        %904 = vadd.xlane.f32.xlu0 %v903
        %v905 = vpop.xlane.xlu0 %904
        %v906 = vsel %vm734, %v902, 0.0
        %907 = vadd.xlane.f32.xlu0 %v906
        %v908 = vpop.xlane.xlu0 %907
        %v909 = vrcp.pop %v905
        %v910 = vrcp.pop %v908
        %v911 = vmul.f32 %v900, %v909
        %v912 = vmul.f32 %v902, %v910
        %v913 = vpack.c.bf16 %v911, %v911
        %v914 = vpack.c.bf16 %v912, %v912
        %915 = vrot.lane.b32.xlu0 %v731, 56
        %v916 = vpop.permute.xlu0 %915
        %v918 = vsel %vm734, %v913, 0
        %v921 = vsel %vm807, %v916, 0
        %923 = vmatpush.bf16.msra.mxu0 0
        %924 = vmatpush.bf16.msra.mxu0 0
        %925 = vmatpush.bf16.msra.mxu0 0
        %926 = vmatpush.bf16.msra.mxu0 0
        %927 = vmatpush.bf16.msra.mxu0 0
        %928 = vmatpush.bf16.msra.mxu0 0
        %929 = vmatpush.bf16.msra.mxu0 0
        %930 = vmatpush.bf16.msra.mxu0 %v921
        %931 = vmatmul.bf16.gmra.mxu0 %v918
        %v932 = vpop.f32.mrf.mxu0
        %v933 = vadd.f32 0.0, %v932
        %v934 = vpop.f32.mrf.mxu0
        %935 = vdwg.mxu0
        %936 = vrot.lane.b32.xlu0 %v756, 56
        %v937 = vpop.permute.xlu0 %936
        %v939 = vsel %vm734, %v914, 0
        %v942 = vsel %vm807, %v937, 0
        %944 = vmatpush.bf16.msra.mxu0 0
        %945 = vmatpush.bf16.msra.mxu0 0
        %946 = vmatpush.bf16.msra.mxu0 0
        %947 = vmatpush.bf16.msra.mxu0 0
        %948 = vmatpush.bf16.msra.mxu0 0
        %949 = vmatpush.bf16.msra.mxu0 0
        %950 = vmatpush.bf16.msra.mxu0 0
        %951 = vmatpush.bf16.msra.mxu0 %v942
        %952 = vmatmul.bf16.gmra.mxu0 %v939
        %v953 = vpop.f32.mrf.mxu0
        %v954 = vadd.f32 0.0, %v953
        %v955 = vpop.f32.mrf.mxu0
        %956 = vdwg.mxu0
        %957 = vrot.lane.b32.xlu0 %v731, 112
        %v958 = vpop.permute.xlu0 %957
        %959 = vrot.lane.b32.xlu0 %v731, 80
        %v960 = vpop.permute.xlu0 %959
        %v962 = vsel %vm734, %v958, 0
        %v965 = vsel %vm734, %v960, 0
        %967 = vmatpush.bf16.xpose.msra.mxu0 0
        %968 = vmatpush.bf16.xpose.msra.mxu0 0
        %969 = vmatpush.bf16.xpose.msra.mxu0 0
        %970 = vmatpush.bf16.xpose.msra.mxu0 0
        %971 = vmatpush.bf16.xpose.msra.mxu0 0
        %972 = vmatpush.bf16.xpose.msra.mxu0 0
        %973 = vmatpush.bf16.xpose.msra.mxu0 0
        %974 = vmatpush.bf16.xpose.msra.mxu0 %v965
        %975 = vmatmul.bf16.gmra.mxu0 %v962
        %v976 = vpop.f32.mrf.mxu0
        %v977 = vadd.f32 0.0, %v976
        %v978 = vpop.f32.mrf.mxu0
        %979 = vdwg.mxu0
        %980 = vrot.lane.b32.xlu0 %v756, 112
        %v981 = vpop.permute.xlu0 %980
        %982 = vrot.lane.b32.xlu0 %v756, 80
        %v983 = vpop.permute.xlu0 %982
        %v985 = vsel %vm734, %v981, 0
        %v988 = vsel %vm734, %v983, 0
        %990 = vmatpush.bf16.xpose.msra.mxu0 0
        %991 = vmatpush.bf16.xpose.msra.mxu0 0
        %992 = vmatpush.bf16.xpose.msra.mxu0 0
        %993 = vmatpush.bf16.xpose.msra.mxu0 0
        %994 = vmatpush.bf16.xpose.msra.mxu0 0
        %995 = vmatpush.bf16.xpose.msra.mxu0 0
        %996 = vmatpush.bf16.xpose.msra.mxu0 0
        %997 = vmatpush.bf16.xpose.msra.mxu0 %v988
        %998 = vmatmul.bf16.gmra.mxu0 %v985
        %v999 = vpop.f32.mrf.mxu0
        %v1000 = vadd.f32 0.0, %v999
        %v1001 = vpop.f32.mrf.mxu0
        %1002 = vdwg.mxu0
        %v1003 = vsel %vm734, %v977, -inf
        %1004 = vmax.xlane.f32.xlu0 %v1003
        %v1005 = vpop.xlane.xlu0 %1004
        %v1006 = vsel %vm734, %v1000, -inf
        %1007 = vmax.xlane.f32.xlu0 %v1006
        %v1008 = vpop.xlane.xlu0 %1007
        %v1009 = vsub.f32 %v977, %v1005
        %v1010 = vsub.f32 %v1000, %v1008
        %v1011 = vmul.f32 %v1009, 1.442695
        %v1012 = vpow.pop %v1011
        %v1013 = vmul.f32 %v1010, 1.442695
        %v1014 = vpow.pop %v1013
        %v1015 = vsel %vm734, %v1012, 0.0
        %1016 = vadd.xlane.f32.xlu0 %v1015
        %v1017 = vpop.xlane.xlu0 %1016
        %v1018 = vsel %vm734, %v1014, 0.0
        %1019 = vadd.xlane.f32.xlu0 %v1018
        %v1020 = vpop.xlane.xlu0 %1019
        %v1021 = vrcp.pop %v1017
        %v1022 = vrcp.pop %v1020
        %v1023 = vmul.f32 %v1012, %v1021
        %v1024 = vmul.f32 %v1014, %v1022
        %v1025 = vpack.c.bf16 %v1023, %v1023
        %v1026 = vpack.c.bf16 %v1024, %v1024
        %1027 = vrot.lane.b32.xlu0 %v731, 48
        %v1028 = vpop.permute.xlu0 %1027
        %v1030 = vsel %vm734, %v1025, 0
        %v1033 = vsel %vm807, %v1028, 0
        %1035 = vmatpush.bf16.msra.mxu0 0
        %1036 = vmatpush.bf16.msra.mxu0 0
        %1037 = vmatpush.bf16.msra.mxu0 0
        %1038 = vmatpush.bf16.msra.mxu0 0
        %1039 = vmatpush.bf16.msra.mxu0 0
        %1040 = vmatpush.bf16.msra.mxu0 0
        %1041 = vmatpush.bf16.msra.mxu0 0
        %1042 = vmatpush.bf16.msra.mxu0 %v1033
        %1043 = vmatmul.bf16.gmra.mxu0 %v1030
        %v1044 = vpop.f32.mrf.mxu0
        %v1045 = vadd.f32 0.0, %v1044
        %v1046 = vpop.f32.mrf.mxu0
        %1047 = vdwg.mxu0
        %1048 = vrot.lane.b32.xlu0 %v756, 48
        %v1049 = vpop.permute.xlu0 %1048
        %v1051 = vsel %vm734, %v1026, 0
        %v1054 = vsel %vm807, %v1049, 0
        %1056 = vmatpush.bf16.msra.mxu0 0
        %1057 = vmatpush.bf16.msra.mxu0 0
        %1058 = vmatpush.bf16.msra.mxu0 0
        %1059 = vmatpush.bf16.msra.mxu0 0
        %1060 = vmatpush.bf16.msra.mxu0 0
        %1061 = vmatpush.bf16.msra.mxu0 0
        %1062 = vmatpush.bf16.msra.mxu0 0
        %1063 = vmatpush.bf16.msra.mxu0 %v1054
        %1064 = vmatmul.bf16.gmra.mxu0 %v1051
        %v1065 = vpop.f32.mrf.mxu0
        %v1066 = vadd.f32 0.0, %v1065
        %v1067 = vpop.f32.mrf.mxu0
        %1068 = vdwg.mxu0
        %1069 = vrot.lane.b32.xlu0 %v731, 104
        %v1070 = vpop.permute.xlu0 %1069
        %1071 = vrot.lane.b32.xlu0 %v731, 72
        %v1072 = vpop.permute.xlu0 %1071
        %v1074 = vsel %vm734, %v1070, 0
        %v1077 = vsel %vm734, %v1072, 0
        %1079 = vmatpush.bf16.xpose.msra.mxu0 0
        %1080 = vmatpush.bf16.xpose.msra.mxu0 0
        %1081 = vmatpush.bf16.xpose.msra.mxu0 0
        %1082 = vmatpush.bf16.xpose.msra.mxu0 0
        %1083 = vmatpush.bf16.xpose.msra.mxu0 0
        %1084 = vmatpush.bf16.xpose.msra.mxu0 0
        %1085 = vmatpush.bf16.xpose.msra.mxu0 0
        %1086 = vmatpush.bf16.xpose.msra.mxu0 %v1077
        %1087 = vmatmul.bf16.gmra.mxu0 %v1074
        %v1088 = vpop.f32.mrf.mxu0
        %v1089 = vadd.f32 0.0, %v1088
        %v1090 = vpop.f32.mrf.mxu0
        %1091 = vdwg.mxu0
        %1092 = vrot.lane.b32.xlu0 %v756, 104
        %v1093 = vpop.permute.xlu0 %1092
        %1094 = vrot.lane.b32.xlu0 %v756, 72
        %v1095 = vpop.permute.xlu0 %1094
        %v1097 = vsel %vm734, %v1093, 0
        %v1100 = vsel %vm734, %v1095, 0
        %1102 = vmatpush.bf16.xpose.msra.mxu0 0
        %1103 = vmatpush.bf16.xpose.msra.mxu0 0
        %1104 = vmatpush.bf16.xpose.msra.mxu0 0
        %1105 = vmatpush.bf16.xpose.msra.mxu0 0
        %1106 = vmatpush.bf16.xpose.msra.mxu0 0
        %1107 = vmatpush.bf16.xpose.msra.mxu0 0
        %1108 = vmatpush.bf16.xpose.msra.mxu0 0
        %1109 = vmatpush.bf16.xpose.msra.mxu0 %v1100
        %1110 = vmatmul.bf16.gmra.mxu0 %v1097
        %v1111 = vpop.f32.mrf.mxu0
        %v1112 = vadd.f32 0.0, %v1111
        %v1113 = vpop.f32.mrf.mxu0
        %1114 = vdwg.mxu0
        %v1115 = vsel %vm734, %v1089, -inf
        %1116 = vmax.xlane.f32.xlu0 %v1115
        %v1117 = vpop.xlane.xlu0 %1116
        %v1118 = vsel %vm734, %v1112, -inf
        %1119 = vmax.xlane.f32.xlu0 %v1118
        %v1120 = vpop.xlane.xlu0 %1119
        %v1121 = vsub.f32 %v1089, %v1117
        %v1122 = vsub.f32 %v1112, %v1120
        %v1123 = vmul.f32 %v1121, 1.442695
        %v1124 = vpow.pop %v1123
        %v1125 = vmul.f32 %v1122, 1.442695
        %v1126 = vpow.pop %v1125
        %v1127 = vsel %vm734, %v1124, 0.0
        %1128 = vadd.xlane.f32.xlu0 %v1127
        %v1129 = vpop.xlane.xlu0 %1128
        %v1130 = vsel %vm734, %v1126, 0.0
        %1131 = vadd.xlane.f32.xlu0 %v1130
        %v1132 = vpop.xlane.xlu0 %1131
        %v1133 = vrcp.pop %v1129
        %v1134 = vrcp.pop %v1132
        %v1135 = vmul.f32 %v1124, %v1133
        %v1136 = vmul.f32 %v1126, %v1134
        %v1137 = vpack.c.bf16 %v1135, %v1135
        %v1138 = vpack.c.bf16 %v1136, %v1136
        %1139 = vrot.lane.b32.xlu0 %v731, 40
        %v1140 = vpop.permute.xlu0 %1139
        %v1142 = vsel %vm734, %v1137, 0
        %v1145 = vsel %vm807, %v1140, 0
        %1147 = vmatpush.bf16.msra.mxu0 0
        %1148 = vmatpush.bf16.msra.mxu0 0
        %1149 = vmatpush.bf16.msra.mxu0 0
        %1150 = vmatpush.bf16.msra.mxu0 0
        %1151 = vmatpush.bf16.msra.mxu0 0
        %1152 = vmatpush.bf16.msra.mxu0 0
        %1153 = vmatpush.bf16.msra.mxu0 0
        %1154 = vmatpush.bf16.msra.mxu0 %v1145
        %1155 = vmatmul.bf16.gmra.mxu0 %v1142
        %v1156 = vpop.f32.mrf.mxu0
        %v1157 = vadd.f32 0.0, %v1156
        %v1158 = vpop.f32.mrf.mxu0
        %1159 = vdwg.mxu0
        %1160 = vrot.lane.b32.xlu0 %v756, 40
        %v1161 = vpop.permute.xlu0 %1160
        %v1163 = vsel %vm734, %v1138, 0
        %v1166 = vsel %vm807, %v1161, 0
        %1168 = vmatpush.bf16.msra.mxu0 0
        %1169 = vmatpush.bf16.msra.mxu0 0
        %1170 = vmatpush.bf16.msra.mxu0 0
        %1171 = vmatpush.bf16.msra.mxu0 0
        %1172 = vmatpush.bf16.msra.mxu0 0
        %1173 = vmatpush.bf16.msra.mxu0 0
        %1174 = vmatpush.bf16.msra.mxu0 0
        %1175 = vmatpush.bf16.msra.mxu0 %v1166
        %1176 = vmatmul.bf16.gmra.mxu0 %v1163
        %v1177 = vpop.f32.mrf.mxu0
        %v1178 = vadd.f32 0.0, %v1177
        %v1179 = vpop.f32.mrf.mxu0
        %1180 = vdwg.mxu0
        %1183 = vrot.lane.b32.xlu0 %v933, 8
        %v1184 = vpop.permute.xlu0 %1183
        %1185 = vrot.lane.b32.xlu0 %v954, 8
        %v1186 = vpop.permute.xlu0 %1185
        %1191 = vrot.lane.b32.xlu0 %v1045, 16
        %v1192 = vpop.permute.xlu0 %1191
        %1193 = vrot.lane.b32.xlu0 %v1066, 16
        %v1194 = vpop.permute.xlu0 %1193
        %1199 = vrot.lane.b32.xlu0 %v1157, 24
        %v1200 = vpop.permute.xlu0 %1199
        %1201 = vrot.lane.b32.xlu0 %v1178, 24
        %v1202 = vpop.permute.xlu0 %1201
        %v1205 = vsel %vm734, %v821, %v1184
        %v1206 = vsel %vm734, %v842, %v1186
        %vm1207 = vcmask 130048
        %v1208 = vsel %vm1207, %v1205, %v1192
        %v1209 = vsel %vm1207, %v1206, %v1194
        %vm1210 = vcmask 195584
        %v1211 = vsel %vm1210, %v1208, %v1200
        %v1212 = vsel %vm1210, %v1209, %v1202
        %v1213 = vpack.c.bf16 %v1212, %v1211
        %v1214 = vld [vmem:[%s650] sm:$0xf]
        %v1215 = vld [vmem:[%s650 + $0x4] sm:$0xf]
        %v1216 = vld [vmem:[%s650 + $0x8] sm:$0xf]
        %v1217 = vld [vmem:[%s650 + $0xc] sm:$0xf]
        %v1218 = vld [vmem:[%s653] sm:$0x1]
        %v1220 = vperm.slane %v1218, 0
        %v1226 = vunpack.c.l.b16 %v1214
        %v1227 = vunpack.c.l.b16 %v1215
        %v1228 = vunpack.c.l.b16 %v1216
        %v1229 = vunpack.c.l.b16 %v1217
        %v1230 = vpack.c.b16 %v1227, %v1226
        %v1231 = vpack.c.b16 %v1229, %v1228
        %v1235 = vsel %vm709, %v1213, 0
        %1237 = vmatpush.bf16.msra.mxu0 0
        %1238 = vmatpush.bf16.msra.mxu0 0
        %1239 = vmatpush.bf16.msra.mxu0 0
        %1240 = vmatpush.bf16.msra.mxu0 0
        %1241 = vmatpush.bf16.msra.mxu0 0
        %1242 = vmatpush.bf16.msra.mxu0 0
        %1243 = vmatpush.bf16.msra.mxu0 %v1231
        %1244 = vmatpush.bf16.msra.mxu0 %v1230
        %1245 = vmatmul.bf16.gmra.mxu0 %v1235
        %v1246 = vpop.f32.mrf.mxu0
        %v1247 = vadd.f32 %v1220, %v1246
        %v1248 = vpop.f32.mrf.mxu0
        %v1249 = vadd.f32 %v1220, %v1248
        %1250 = vdwg.mxu0
        %v1251 = vadd.f32 %v686, %v1247
        %v1252 = vadd.f32 %v687, %v1249
        %v1253 = vld [vmem:[%s551] sm:$0x1]
        %v1254 = vld [vmem:[%s672] sm:$0x1]
        %v1255 = vsel %vm709, %v1251, 0.0
        %1256 = vadd.xlane.f32.xlu0 %v1255
        %v1257 = vpop.xlane.xlu0 %1256
        %v1258 = vsel %vm709, %v1252, 0.0
        %1259 = vadd.xlane.f32.xlu0 %v1258
        %v1260 = vpop.xlane.xlu0 %1259
        %v1261 = vrcp.pop 32.0
        %v1262 = vmul.f32 32.0, %v1261
        %v1263 = vsub.f32 1.0, %v1262
        %v1264 = vmul.f32 %v1261, %v1263
        %v1265 = vadd.f32 %v1261, %v1264
        %vm1266 = vweird.f32 %v1261
        %v1267 = vsel %vm1266, %v1261, %v1265
        %v1268 = vmul.f32 %v1257, %v1267
        %v1269 = vmul.f32 %v1260, %v1267
        %v1270 = vsub.f32 %v1251, %v1268
        %v1271 = vsub.f32 %v1252, %v1269
        %v1272 = vmul.f32 %v1270, %v1270
        %v1273 = vmul.f32 %v1271, %v1271
        %v1274 = vsel %vm709, %v1272, 0.0
        %1275 = vadd.xlane.f32.xlu0 %v1274
        %v1276 = vpop.xlane.xlu0 %1275
        %v1277 = vsel %vm709, %v1273, 0.0
        %1278 = vadd.xlane.f32.xlu0 %v1277
        %v1279 = vpop.xlane.xlu0 %1278
        %v1280 = vmul.f32 %v1276, %v1267
        %v1281 = vmul.f32 %v1279, %v1267
        %v1282 = vadd.f32 %v1280, 1e-05
        %v1283 = vadd.f32 %v1281, 1e-05
        %v1284 = vrsqrt.pop %v1282
        %v1285 = vmul.f32 %v1284, %v1282
        %v1286 = vmul.f32 %v1285, %v1284
        %v1287 = vmul.f32 0.5, %v1286
        %v1288 = vsub.f32 1.5, %v1287
        %v1289 = vmul.f32 %v1284, %v1288
        %vm1290 = vweird.f32 %v1282
        %vm1291 = vweird.f32 %v1284
        %vm1292 = vmor %vm1290, %vm1291
        %v1293 = vsel %vm1292, %v1284, %v1289
        %v1294 = vrsqrt.pop %v1283
        %v1295 = vmul.f32 %v1294, %v1283
        %v1296 = vmul.f32 %v1295, %v1294
        %v1297 = vmul.f32 0.5, %v1296
        %v1298 = vsub.f32 1.5, %v1297
        %v1299 = vmul.f32 %v1294, %v1298
        %vm1300 = vweird.f32 %v1283
        %vm1301 = vweird.f32 %v1294
        %vm1302 = vmor %vm1300, %vm1301
        %v1303 = vsel %vm1302, %v1294, %v1299
        %v1305 = vperm.slane %v1253, 0
        %v1307 = vmul.f32 %v1293, %v1305
        %v1308 = vmul.f32 %v1303, %v1305
        %v1309 = vmul.f32 %v1270, %v1307
        %v1310 = vmul.f32 %v1271, %v1308
        %v1312 = vperm.slane %v1254, 0
        %v1314 = vadd.f32 %v1309, %v1312
        %v1315 = vadd.f32 %v1310, %v1312
        %v1316 = vpack.c.bf16 %v1315, %v1314
        %v1317 = vld [vmem:[%s658] sm:$0xf]
        %v1318 = vld [vmem:[%s658 + $0x4] sm:$0xf]
        %v1319 = vld [vmem:[%s658 + $0x8] sm:$0xf]
        %v1320 = vld [vmem:[%s658 + $0xc] sm:$0xf]
        %v1321 = vld [vmem:[%s661] sm:$0x1]
        %v1323 = vperm.slane %v1321, 0
        %v1329 = vunpack.c.l.b16 %v1317
        %v1330 = vunpack.c.l.b16 %v1318
        %v1331 = vunpack.c.l.b16 %v1319
        %v1332 = vunpack.c.l.b16 %v1320
        %v1333 = vpack.c.b16 %v1330, %v1329
        %v1334 = vpack.c.b16 %v1332, %v1331
        %v1338 = vsel %vm709, %v1316, 0
        %1340 = vmatpush.bf16.msra.mxu0 0
        %1341 = vmatpush.bf16.msra.mxu0 0
        %1342 = vmatpush.bf16.msra.mxu0 0
        %1343 = vmatpush.bf16.msra.mxu0 0
        %1344 = vmatpush.bf16.msra.mxu0 0
        %1345 = vmatpush.bf16.msra.mxu0 0
        %1346 = vmatpush.bf16.msra.mxu0 %v1334
        %1347 = vmatpush.bf16.msra.mxu0 %v1333
        %1348 = vmatmul.bf16.gmra.mxu0 %v1338
        %v1349 = vpop.f32.mrf.mxu0
        %v1350 = vadd.f32 %v1323, %v1349
        %v1351 = vpop.f32.mrf.mxu0
        %v1352 = vadd.f32 %v1323, %v1351
        %1353 = vdwg.mxu0
        %v1354 = vmax.f32 %v1350, 0.0
        %v1355 = vmax.f32 %v1352, 0.0
        %v1356 = vpack.c.bf16 %v1355, %v1354
        %v1357 = vld [vmem:[%s666] sm:$0xf]
        %v1358 = vld [vmem:[%s666 + $0x4] sm:$0xf]
        %v1359 = vld [vmem:[%s666 + $0x8] sm:$0xf]
        %v1360 = vld [vmem:[%s666 + $0xc] sm:$0xf]
        %v1361 = vld [vmem:[%s666 + $0x10] sm:$0xf]
        %v1362 = vld [vmem:[%s666 + $0x14] sm:$0xf]
        %v1363 = vld [vmem:[%s666 + $0x18] sm:$0xf]
        %v1364 = vld [vmem:[%s666 + $0x1c] sm:$0xf]
        %v1365 = vld [vmem:[%s669] sm:$0x1]
        %v1367 = vperm.slane %v1365, 0
        %v1377 = vunpack.c.l.b16 %v1357
        %v1378 = vunpack.c.l.b16 %v1358
        %v1379 = vunpack.c.l.b16 %v1359
        %v1380 = vunpack.c.l.b16 %v1360
        %v1381 = vunpack.c.l.b16 %v1361
        %v1382 = vunpack.c.l.b16 %v1362
        %v1383 = vunpack.c.l.b16 %v1363
        %v1384 = vunpack.c.l.b16 %v1364
        %v1385 = vpack.c.b16 %v1378, %v1377
        %v1386 = vpack.c.b16 %v1380, %v1379
        %v1387 = vpack.c.b16 %v1382, %v1381
        %v1388 = vpack.c.b16 %v1384, %v1383
        %vm1393 = vcmask 523264
        %v1395 = vsel %vm1393, %v1356, 0
        %1397 = vmatpush.bf16.msra.mxu0 0
        %1398 = vmatpush.bf16.msra.mxu0 0
        %1399 = vmatpush.bf16.msra.mxu0 0
        %1400 = vmatpush.bf16.msra.mxu0 0
        %1401 = vmatpush.bf16.msra.mxu0 %v1388
        %1402 = vmatpush.bf16.msra.mxu0 %v1387
        %1403 = vmatpush.bf16.msra.mxu0 %v1386
        %1404 = vmatpush.bf16.msra.mxu0 %v1385
        %1405 = vmatmul.bf16.gmra.mxu0 %v1395
        %v1406 = vpop.f32.mrf.mxu0
        %v1407 = vadd.f32 %v1367, %v1406
        %v1408 = vpop.f32.mrf.mxu0
        %v1409 = vadd.f32 %v1367, %v1408
        %1410 = vdwg.mxu0
        %v1411 = vadd.f32 %v1314, %v1407
        %v1412 = vadd.f32 %v1315, %v1409
        %v1413 = vld [vmem:[%s560] sm:$0x1]
        %v1414 = vld [vmem:[%s675] sm:$0x1]
        %v1415 = vsel %vm709, %v1411, 0.0
        %1416 = vadd.xlane.f32.xlu0 %v1415
        %v1417 = vpop.xlane.xlu0 %1416
        %v1418 = vsel %vm709, %v1412, 0.0
        %1419 = vadd.xlane.f32.xlu0 %v1418
        %v1420 = vpop.xlane.xlu0 %1419
        %v1421 = vmul.f32 %v1417, %v1267
        %v1422 = vmul.f32 %v1420, %v1267
        %v1423 = vsub.f32 %v1411, %v1421
        %v1424 = vsub.f32 %v1412, %v1422
        %v1425 = vmul.f32 %v1423, %v1423
        %v1426 = vmul.f32 %v1424, %v1424
        %v1427 = vsel %vm709, %v1425, 0.0
        %1428 = vadd.xlane.f32.xlu0 %v1427
        %v1429 = vpop.xlane.xlu0 %1428
        %v1430 = vsel %vm709, %v1426, 0.0
        %1431 = vadd.xlane.f32.xlu0 %v1430
        %v1432 = vpop.xlane.xlu0 %1431
        %v1433 = vmul.f32 %v1429, %v1267
        %v1434 = vmul.f32 %v1432, %v1267
        %v1435 = vadd.f32 %v1433, 1e-05
        %v1436 = vadd.f32 %v1434, 1e-05
        %v1437 = vrsqrt.pop %v1435
        %v1438 = vmul.f32 %v1437, %v1435
        %v1439 = vmul.f32 %v1438, %v1437
        %v1440 = vmul.f32 0.5, %v1439
        %v1441 = vsub.f32 1.5, %v1440
        %v1442 = vmul.f32 %v1437, %v1441
        %vm1443 = vweird.f32 %v1435
        %vm1444 = vweird.f32 %v1437
        %vm1445 = vmor %vm1443, %vm1444
        %v1446 = vsel %vm1445, %v1437, %v1442
        %v1447 = vrsqrt.pop %v1436
        %v1448 = vmul.f32 %v1447, %v1436
        %v1449 = vmul.f32 %v1448, %v1447
        %v1450 = vmul.f32 0.5, %v1449
        %v1451 = vsub.f32 1.5, %v1450
        %v1452 = vmul.f32 %v1447, %v1451
        %vm1453 = vweird.f32 %v1436
        %vm1454 = vweird.f32 %v1447
        %vm1455 = vmor %vm1453, %vm1454
        %v1456 = vsel %vm1455, %v1447, %v1452
        %v1458 = vperm.slane %v1413, 0
        %v1460 = vmul.f32 %v1446, %v1458
        %v1461 = vmul.f32 %v1456, %v1458
        %v1462 = vmul.f32 %v1423, %v1460
        %v1463 = vmul.f32 %v1424, %v1461
        %v1465 = vperm.slane %v1414, 0
        %v1467 = vadd.f32 %v1462, %v1465
        %v1468 = vadd.f32 %v1463, %v1465
        %1469 = vst.msk [vmem:[#allocation2] sm:$0xff] %vm709, %v1467
        %1470 = vst.msk [vmem:[#allocation2 + $0x8] sm:$0xff] %vm709, %v1468
        %p1471 = scmp.eq.s32.totalorder %s32, 1
        // Predicated region
        $region93: #{tpu_custom_call.1} parent=71 // pred_check
          %p1472 = pneg %p1471
        $region94: #{tpu_custom_call.1} parent=71 // pred_check_branch
          %1474 = sbr.rel (%p1472) target = $region96
        $region95: #{tpu_custom_call.1} parent=71 // pred_region
          %1475 = vst.msk [vmem:[#allocation11] sm:$0xff] %vm709, %v1467
          %1476 = vst.msk [vmem:[#allocation11 + $0x8] sm:$0xff] %vm709, %v1468
        $region96: #{tpu_custom_call.1} parent=71 // pred_fallthru
          _
        // Predicated region
        $region97: #{tpu_custom_call.1} parent=71 // pred_check
          %p1477 = pneg %p378
        $region98: #{tpu_custom_call.1} parent=71 // pred_check_branch
          %1479 = sbr.rel (%p1477) target = $region100
        $region99: #{tpu_custom_call.1} parent=71 // pred_region
          %1481 = vsyncadd [#allocation5], 0
          %s1482 = sshll.u32 [#allocation11], 4
          %s1483 = int_to_ptr.vmem [resolvable:$true] %s1482
          %s1484 = sshll.u32 %s13, 4
          %s1485 = int_to_ptr.hbm [resolvable:$true] %s1484
          %1490 = dma.vmem_to_hbm [thread:$0]  %s1483, 256, %s1485, [#allocation5], 128, 128, 8
        $region100: #{tpu_custom_call.1} parent=71 // pred_fallthru
          _
        // Predicated region
        $region101: #{tpu_custom_call.1} parent=71 // pred_check
          %p1491 = pneg %p378
        $region102: #{tpu_custom_call.1} parent=71 // pred_check_branch
          %1493 = sbr.rel (%p1491) target = $region104
        $region103: #{tpu_custom_call.1} parent=71 // pred_region
          %1495 = dma.done [#allocation5], 256
        $region104: #{tpu_custom_call.1} parent=71 // pred_fallthru
          _
      $region72: #{tpu_custom_call.1} parent=5 // pred_fallthru
        _
      %p1496 = scmp.le.s32.totalorder 2, %s27
      // Predicated region
      $region105: #{tpu_custom_call.1} parent=5 // pred_check
        %p1497 = pneg %p1496
      $region106: #{tpu_custom_call.1} parent=5 // pred_check_branch
        %1499 = sbr.rel (%p1497) target = $region108
      $region107: #{tpu_custom_call.1} parent=5 // pred_region
        %s1500 = ssub.s32 %s27, 2
      $region108: #{tpu_custom_call.1} parent=5 // pred_fallthru
        _
    $region6: #{tpu_custom_call.1} parent=1 // loop_footer
      %s31 = sadd.s32 1, %s27
    $region7: #{tpu_custom_call.1} parent=1 // loop_footer_branch
      %26 = sbr.rel target = $region3
    $region8: #{tpu_custom_call.1} parent=1 // loop_exit
      _
    %1501 = vsyncpa [#allocation4], 1
    %s1502 = scalar_lea.sflag [#allocation4], 1
    %1503 = vsyncpa %s1502, 1
    %1504 = vsyncpa [#allocation7], 1
    %s1505 = scalar_lea.sflag [#allocation7], 1
    %1506 = vsyncpa %s1505, 1
    %1507 = vsyncpa [#allocation10], 1
    %s1508 = scalar_lea.sflag [#allocation10], 1
    %1509 = vsyncpa %s1508, 1
    %1510 = vsyncpa [#allocation5], 1
    %s1511 = scalar_lea.sflag [#allocation5], 1
    %1512 = vsyncpa %s1511, 1

</llo_original>
